<compile_context>
chip_gen: v7x
topology: tpu7x:2x2x1
jax: 0.10.0
libtpu: 0.0.40
codegen_flags: <defaults>
</compile_context>

<pallas_src>
import functools

import jax
import jax.numpy as jnp
import numpy as np
from jax import lax
from jax.experimental import pallas as pl
from jax.experimental.pallas import tpu as pltpu


def _layernorm(x, gamma, beta, eps=1e-5):
    mu = jnp.mean(x, axis=-1, keepdims=True)
    var = jnp.mean((x - mu) ** 2, axis=-1, keepdims=True)
    return (x - mu) * lax.rsqrt(var + eps) * gamma + beta


def transformer_block_kernel(
    xq_ref, xk_ref, xv_ref,
    wq_ref, wk_ref, wv_ref, wo_ref,
    w1_ref, w2_ref, b1_ref,
    bvec_ref,   # (5, D) f32: [bq*scale, bk, bv, bo, b2]
    ln_ref,     # (4, D) f32: [g1, be1, g2, be2]
    out_ref, attn_ref,
    *, num_heads, head_dim, ff_tile):
    f32 = jnp.float32
    bf16 = jnp.bfloat16

    xq = xq_ref[0]                       # (Tq, D) f32 — kept for the residual
    xk = xk_ref[0]                       # (T, D)  bf16 (cast in wrapper)
    xv = xv_ref[0]                       # (T, D)  bf16

    bq = bvec_ref[0:1, :]
    bk = bvec_ref[1:2, :]
    bv = bvec_ref[2:3, :]
    bo = bvec_ref[3:4, :]
    b2 = bvec_ref[4:5, :]

    # Full-width projections: one (.., D) @ (D, D) matmul each (full MXU
    # contraction depth).  The 1/sqrt(dh) scale is folded into wq/bq already.
    q_all = jnp.dot(xq.astype(bf16), wq_ref[...], preferred_element_type=f32) + bq
    k_all = jnp.dot(xk, wk_ref[...], preferred_element_type=f32) + bk
    v_all = jnp.dot(xv, wv_ref[...], preferred_element_type=f32) + bv

    q_b = q_all.astype(bf16)
    k_b = k_all.astype(bf16)
    v_b = v_all.astype(bf16)

    # Per-head attention as a short static loop over lane slices of the
    # projected activations (H is small; slices are static -> cheap views).
    ctx_parts = []
    for h in range(num_heads):
        lo = h * head_dim
        qh = q_b[:, lo:lo + head_dim]          # (Tq, dh)
        kh = k_b[:, lo:lo + head_dim]          # (T, dh)
        vh = v_b[:, lo:lo + head_dim]          # (T, dh)

        scores = lax.dot_general(
            qh, kh, (((1,), (1,)), ((), ())),
            preferred_element_type=f32)        # (Tq, T)
        scores = scores - jnp.max(scores, axis=-1, keepdims=True)
        # exp / row-sum stay f32 (portable to v5e: no bf16 VPU/EUP there).
        p = jnp.exp(scores)
        # NOTE: approx reciprocal (EUP) -> rows sum to ~1 (not bit-exact).
        inv = pl.reciprocal(jnp.sum(p, axis=-1, keepdims=True), approx=True)
        attn = p * inv
        attn_ref[0, h] = attn.astype(attn_ref.dtype)
        ctx_parts.append(
            jnp.dot(attn.astype(bf16), vh, preferred_element_type=f32))

    # Lane-concat the per-head contexts into one lane-dense (Tq, D) operand and
    # do a single full-depth output projection (K = D, not H matmuls of K = dh).
    ctx = jnp.concatenate(ctx_parts, axis=-1).astype(bf16)          # (Tq, D)
    attn_out = jnp.dot(ctx, wo_ref[...], preferred_element_type=f32) + bo

    # Residual 1 + LayerNorm 1 (dropout1 == identity in eval mode).
    res1 = attn_out + xq
    n1 = _layernorm(res1, ln_ref[0:1, :], ln_ref[1:2, :])

    # FeedForward (Linear -> ReLU -> Linear), chunked over d_ff so the
    # (Tq, ff_tile) f32 intermediate stays bounded.
    n1_b = n1.astype(bf16)
    d_ff = w1_ref.shape[1]
    ff = jnp.zeros_like(n1)
    for f0 in range(0, d_ff, ff_tile):
        h1 = jnp.dot(n1_b, w1_ref[:, f0:f0 + ff_tile],
                     preferred_element_type=f32) + b1_ref[:, f0:f0 + ff_tile]
        h1 = jnp.maximum(h1, 0.0)
        ff = ff + jnp.dot(h1.astype(bf16), w2_ref[f0:f0 + ff_tile, :],
                          preferred_element_type=f32)
    ff = ff + b2

    # Residual 2 + LayerNorm 2 (dropout2 == identity in eval mode).
    res2 = ff + n1
    n2 = _layernorm(res2, ln_ref[2:3, :], ln_ref[3:4, :])
    out_ref[0] = n2.astype(out_ref.dtype)


def _default_vmem_limit_bytes():
    """~3/4 of physical VMEM, capped at 100 MiB (v5e/v6e: 96 MiB, v7x: 48 MiB)."""
    cap = 64 * 1024 * 1024
    try:
        cap = int(getattr(pltpu.get_tpu_info(), "vmem_capacity_bytes", cap))
    except Exception:
        pass
    return int(min(cap * 3 // 4, 100 * 1024 * 1024))


def transformer_block(q, k, v, params, *, num_heads, q_tile=None, ff_tile=None,
                      attn_dtype=jnp.bfloat16):
    B, T, D = q.shape
    H = num_heads
    assert D % H == 0
    dh = D // H
    d_ff = params["w1"].shape[1]

    if q_tile is None:
        q_tile = T if T <= 512 else 512
    assert T % q_tile == 0
    nq = T // q_tile
    if ff_tile is None:
        ff_tile = d_ff if d_ff <= 512 else 512
    assert d_ff % ff_tile == 0

    f32, bf16 = jnp.float32, jnp.bfloat16
    scale = 1.0 / float(np.sqrt(dh))

    # One-time weight prep: fold the softmax scale into wq/bq, cast MXU
    # operands to bf16, stack the small per-feature vectors into 2 operands.
    wq = (params["wq"] * scale).astype(bf16)
    wk = params["wk"].astype(bf16)
    wv = params["wv"].astype(bf16)
    wo = params["wo"].astype(bf16)
    w1 = params["w1"].astype(bf16)
    w2 = params["w2"].astype(bf16)
    b1 = params["b1"].astype(f32)
    bvec = jnp.concatenate(
        [params["bq"] * scale, params["bk"], params["bv"],
         params["bo"], params["b2"]], axis=0).astype(f32)            # (5, D)
    lnp = jnp.concatenate(
        [params["g1"], params["be1"], params["g2"], params["be2"]],
        axis=0).astype(f32)                                          # (4, D)

    # K/V feed only matmuls -> cast in the wrapper (half DMA bytes / VMEM).
    k_b = k.astype(bf16)
    v_b = v.astype(bf16)

    q_spec = pl.BlockSpec((1, q_tile, D), lambda b, qi: (b, qi, 0))
    kv_spec = pl.BlockSpec((1, T, D), lambda b, qi: (b, 0, 0))
    out_spec = pl.BlockSpec((1, q_tile, D), lambda b, qi: (b, qi, 0))
    attn_spec = pl.BlockSpec((1, H, q_tile, T), lambda b, qi: (b, 0, qi, 0))

    def const_spec(arr):  # grid-invariant operands (weights / stacked vectors)
        # TODO(synk): on v7x these could additionally be single-buffered
        # (pipeline_mode=pl.Buffered(1)) to halve resident weight VMEM.
        nd = arr.ndim
        return pl.BlockSpec(arr.shape, lambda b, qi, _nd=nd: (0,) * _nd)

    kernel = functools.partial(transformer_block_kernel,
                               num_heads=H, head_dim=dh, ff_tile=ff_tile)

    out, attn_w = pl.pallas_call(
        kernel,
        out_shape=(
            jax.ShapeDtypeStruct((B, T, D), f32),
            jax.ShapeDtypeStruct((B, H, T, T), attn_dtype),
        ),
        grid=(B, nq),
        in_specs=[
            q_spec, kv_spec, kv_spec,
            const_spec(wq), const_spec(wk), const_spec(wv), const_spec(wo),
            const_spec(w1), const_spec(w2), const_spec(b1),
            const_spec(bvec), const_spec(lnp),
        ],
        out_specs=(out_spec, attn_spec),
        compiler_params=pltpu.CompilerParams(
            # No cross-step accumulation -> both axes fully parallel
            # (B*nq >= 2 keeps both v7x TensorCores busy).
            dimension_semantics=("parallel", "parallel"),
            vmem_limit_bytes=_default_vmem_limit_bytes()),
    )(q, k_b, v_b, wq, wk, wv, wo, w1, w2, b1, bvec, lnp)
    return out, attn_w


def transformer_block_ref(q, k, v, params, *, num_heads):
    """Pure-JAX f32 reference of the PyTorch forward (eval mode)."""
    B, T, D = q.shape
    dh = D // num_heads
    scale = 1.0 / np.sqrt(dh)

    def proj(x, w, b):
        return jnp.einsum("btd,de->bte", x, w) + b

    Q = proj(q, params["wq"], params["bq"])
    K = proj(k, params["wk"], params["bk"])
    V = proj(v, params["wv"], params["bv"])

    def split(x):
        return x.reshape(B, T, num_heads, dh).transpose(0, 2, 1, 3)

    Qh, Kh, Vh = split(Q), split(K), split(V)
    scores = jnp.einsum("bhqd,bhkd->bhqk", Qh, Kh) * scale
    attn = jax.nn.softmax(scores, axis=-1)
    ctx = jnp.einsum("bhqk,bhkd->bhqd", attn, Vh)
    ctx = ctx.transpose(0, 2, 1, 3).reshape(B, T, D)
    attn_out = proj(ctx, params["wo"], params["bo"])

    def ln(x, g, b, eps=1e-5):
        mu = jnp.mean(x, -1, keepdims=True)
        var = jnp.mean((x - mu) ** 2, -1, keepdims=True)
        return (x - mu) / jnp.sqrt(var + eps) * g + b

    res1 = attn_out + q
    n1 = ln(res1, params["g1"], params["be1"])
    h1 = jnp.maximum(jnp.einsum("btd,df->btf", n1, params["w1"]) + params["b1"], 0.0)
    ff = jnp.einsum("btf,fd->btd", h1, params["w2"]) + params["b2"]
    n2 = ln(ff + n1, params["g2"], params["be2"])
    return n2, attn


def init_params(key, d_model, d_ff):
    ks = jax.random.split(key, 16)
    s = 0.05
    return {
        "wq": s * jax.random.normal(ks[0], (d_model, d_model), jnp.float32),
        "bq": s * jax.random.normal(ks[1], (1, d_model), jnp.float32),
        "wk": s * jax.random.normal(ks[2], (d_model, d_model), jnp.float32),
        "bk": s * jax.random.normal(ks[3], (1, d_model), jnp.float32),
        "wv": s * jax.random.normal(ks[4], (d_model, d_model), jnp.float32),
        "bv": s * jax.random.normal(ks[5], (1, d_model), jnp.float32),
        "wo": s * jax.random.normal(ks[6], (d_model, d_model), jnp.float32),
        "bo": s * jax.random.normal(ks[7], (1, d_model), jnp.float32),
        "w1": s * jax.random.normal(ks[8], (d_model, d_ff), jnp.float32),
        "b1": s * jax.random.normal(ks[9], (1, d_ff), jnp.float32),
        "w2": s * jax.random.normal(ks[10], (d_ff, d_model), jnp.float32),
        "b2": s * jax.random.normal(ks[11], (1, d_model), jnp.float32),
        "g1": 1.0 + 0.1 * jax.random.normal(ks[12], (1, d_model), jnp.float32),
        "be1": 0.1 * jax.random.normal(ks[13], (1, d_model), jnp.float32),
        "g2": 1.0 + 0.1 * jax.random.normal(ks[14], (1, d_model), jnp.float32),
        "be2": 0.1 * jax.random.normal(ks[15], (1, d_model), jnp.float32),
    }


if __name__ == "__main__":
    # Small but lane-dense shapes (last dim a multiple of 128).
    B, T, D = 2, 16, 128
    num_heads = 4
    d_ff = 256

    key = jax.random.PRNGKey(0)
    k_param, k_q, k_k, k_v = jax.random.split(key, 4)
    params = init_params(k_param, D, d_ff)

    q = jax.random.normal(k_q, (B, T, D), jnp.float32)
    k = jax.random.normal(k_k, (B, T, D), jnp.float32)
    v = jax.random.normal(k_v, (B, T, D), jnp.float32)

    out, attn_w = transformer_block(q, k, v, params, num_heads=num_heads)
    out = jax.block_until_ready(out)
    attn_w = jax.block_until_ready(attn_w)

    out_ref, attn_ref = transformer_block_ref(q, k, v, params, num_heads=num_heads)
    # bf16 MXU operands / bf16 attn output + approx reciprocal -> loose tolerance.
    np.testing.assert_allclose(np.asarray(out), np.asarray(out_ref),
                               rtol=2e-2, atol=2e-2)
    np.testing.assert_allclose(np.asarray(attn_w.astype(jnp.float32)),
                               np.asarray(attn_ref), rtol=2e-2, atol=2e-2)

    print("KERNEL_OK")
</pallas_src>

<mosaic_0001>
module attributes {stable_mosaic.version = 11 : i64} {
  func.func @transformer_block_kernel(%arg0: i32, %arg1: i32, %arg2: memref<1x16x128xf32, #tpu.memory_space<vmem>>, %arg3: memref<1x16x128xbf16, #tpu.memory_space<vmem>>, %arg4: memref<1x16x128xbf16, #tpu.memory_space<vmem>>, %arg5: memref<128x128xbf16, #tpu.memory_space<vmem>>, %arg6: memref<128x128xbf16, #tpu.memory_space<vmem>>, %arg7: memref<128x128xbf16, #tpu.memory_space<vmem>>, %arg8: memref<128x128xbf16, #tpu.memory_space<vmem>>, %arg9: memref<128x256xbf16, #tpu.memory_space<vmem>>, %arg10: memref<256x128xbf16, #tpu.memory_space<vmem>>, %arg11: memref<1x256xf32, #tpu.memory_space<vmem>>, %arg12: memref<5x128xf32, #tpu.memory_space<vmem>>, %arg13: memref<4x128xf32, #tpu.memory_space<vmem>>, %arg14: memref<1x16x128xf32, #tpu.memory_space<vmem>>, %arg15: memref<1x4x16x16xbf16, #tpu.memory_space<vmem>>) attributes {dimension_semantics = [#tpu.dimension_semantics<parallel>, #tpu.dimension_semantics<parallel>], iteration_bounds = array<i64: 2, 1>, scalar_prefetch = 0 : i64, scratch_operands = 0 : i64, tpu.core_type = #tpu.core_type<tc>, window_params = [{transform_indices = @transform_0, window_bounds = array<i64: 1, 16, 128>}, {transform_indices = @transform_1, window_bounds = array<i64: 1, 16, 128>}, {transform_indices = @transform_2, window_bounds = array<i64: 1, 16, 128>}, {pipeline_mode = #tpu.pipeline_mode<synchronous>, transform_indices = @transform_3, window_bounds = array<i64: 128, 128>}, {pipeline_mode = #tpu.pipeline_mode<synchronous>, transform_indices = @transform_4, window_bounds = array<i64: 128, 128>}, {pipeline_mode = #tpu.pipeline_mode<synchronous>, transform_indices = @transform_5, window_bounds = array<i64: 128, 128>}, {pipeline_mode = #tpu.pipeline_mode<synchronous>, transform_indices = @transform_6, window_bounds = array<i64: 128, 128>}, {pipeline_mode = #tpu.pipeline_mode<synchronous>, transform_indices = @transform_7, window_bounds = array<i64: 128, 256>}, {pipeline_mode = #tpu.pipeline_mode<synchronous>, transform_indices = @transform_8, window_bounds = array<i64: 256, 128>}, {pipeline_mode = #tpu.pipeline_mode<synchronous>, transform_indices = @transform_9, window_bounds = array<i64: 1, 256>}, {pipeline_mode = #tpu.pipeline_mode<synchronous>, transform_indices = @transform_10, window_bounds = array<i64: 5, 128>}, {pipeline_mode = #tpu.pipeline_mode<synchronous>, transform_indices = @transform_11, window_bounds = array<i64: 4, 128>}, {transform_indices = @transform_12, window_bounds = array<i64: 1, 16, 128>}, {transform_indices = @transform_13, window_bounds = array<i64: 1, 4, 16, 16>}]} {
    %c0 = arith.constant 0 : index
    %c0_0 = arith.constant 0 : index
    %c0_1 = arith.constant 0 : index
    %0 = vector.load %arg2[%c0, %c0_0, %c0_1] : memref<1x16x128xf32, #tpu.memory_space<vmem>>, vector<1x16x128xf32>
    %1 = vector.shape_cast %0 : vector<1x16x128xf32> to vector<16x128xf32>
    %c0_2 = arith.constant 0 : index
    %c0_3 = arith.constant 0 : index
    %c0_4 = arith.constant 0 : index
    %2 = vector.load %arg3[%c0_2, %c0_3, %c0_4] : memref<1x16x128xbf16, #tpu.memory_space<vmem>>, vector<1x16x128xbf16>
    %3 = vector.shape_cast %2 : vector<1x16x128xbf16> to vector<16x128xbf16>
    %c0_5 = arith.constant 0 : index
    %c0_6 = arith.constant 0 : index
    %c0_7 = arith.constant 0 : index
    %4 = vector.load %arg4[%c0_5, %c0_6, %c0_7] : memref<1x16x128xbf16, #tpu.memory_space<vmem>>, vector<1x16x128xbf16>
    %5 = vector.shape_cast %4 : vector<1x16x128xbf16> to vector<16x128xbf16>
    %c0_8 = arith.constant 0 : index
    %c0_9 = arith.constant 0 : index
    %6 = vector.load %arg12[%c0_8, %c0_9] : memref<5x128xf32, #tpu.memory_space<vmem>>, vector<1x128xf32>
    %c1 = arith.constant 1 : index
    %c0_10 = arith.constant 0 : index
    %7 = vector.load %arg12[%c1, %c0_10] : memref<5x128xf32, #tpu.memory_space<vmem>>, vector<1x128xf32>
    %c2 = arith.constant 2 : index
    %c0_11 = arith.constant 0 : index
    %8 = vector.load %arg12[%c2, %c0_11] : memref<5x128xf32, #tpu.memory_space<vmem>>, vector<1x128xf32>
    %c3 = arith.constant 3 : index
    %c0_12 = arith.constant 0 : index
    %9 = vector.load %arg12[%c3, %c0_12] : memref<5x128xf32, #tpu.memory_space<vmem>>, vector<1x128xf32>
    %c4 = arith.constant 4 : index
    %c0_13 = arith.constant 0 : index
    %10 = vector.load %arg12[%c4, %c0_13] : memref<5x128xf32, #tpu.memory_space<vmem>>, vector<1x128xf32>
    %11 = arith.truncf %1 : vector<16x128xf32> to vector<16x128xbf16>
    %c0_14 = arith.constant 0 : index
    %c0_15 = arith.constant 0 : index
    %12 = vector.load %arg5[%c0_14, %c0_15] : memref<128x128xbf16, #tpu.memory_space<vmem>>, vector<128x128xbf16>
    %cst = arith.constant dense<0.000000e+00> : vector<16x128xf32>
    %13 = tpu.matmul %11, %12, %cst {dimension_numbers = #tpu.dot_dimension_numbers<[1], [0], [0], [1], [0, 0, 1, 1], [], []>} : vector<16x128xbf16>, vector<128x128xbf16>, vector<16x128xf32> -> vector<16x128xf32>
    %14 = vector.broadcast %6 : vector<1x128xf32> to vector<16x128xf32>
    %15 = arith.addf %13, %14 : vector<16x128xf32>
    %c0_16 = arith.constant 0 : index
    %c0_17 = arith.constant 0 : index
    %16 = vector.load %arg6[%c0_16, %c0_17] : memref<128x128xbf16, #tpu.memory_space<vmem>>, vector<128x128xbf16>
    %cst_18 = arith.constant dense<0.000000e+00> : vector<16x128xf32>
    %17 = tpu.matmul %3, %16, %cst_18 {dimension_numbers = #tpu.dot_dimension_numbers<[1], [0], [0], [1], [0, 0, 1, 1], [], []>} : vector<16x128xbf16>, vector<128x128xbf16>, vector<16x128xf32> -> vector<16x128xf32>
    %18 = vector.broadcast %7 : vector<1x128xf32> to vector<16x128xf32>
    %19 = arith.addf %17, %18 : vector<16x128xf32>
    %c0_19 = arith.constant 0 : index
    %c0_20 = arith.constant 0 : index
    %20 = vector.load %arg7[%c0_19, %c0_20] : memref<128x128xbf16, #tpu.memory_space<vmem>>, vector<128x128xbf16>
    %cst_21 = arith.constant dense<0.000000e+00> : vector<16x128xf32>
    %21 = tpu.matmul %5, %20, %cst_21 {dimension_numbers = #tpu.dot_dimension_numbers<[1], [0], [0], [1], [0, 0, 1, 1], [], []>} : vector<16x128xbf16>, vector<128x128xbf16>, vector<16x128xf32> -> vector<16x128xf32>
    %22 = vector.broadcast %8 : vector<1x128xf32> to vector<16x128xf32>
    %23 = arith.addf %21, %22 : vector<16x128xf32>
    %24 = arith.truncf %15 : vector<16x128xf32> to vector<16x128xbf16>
    %25 = arith.truncf %19 : vector<16x128xf32> to vector<16x128xbf16>
    %26 = arith.truncf %23 : vector<16x128xf32> to vector<16x128xbf16>
    %27 = vector.extract_strided_slice %24 {offsets = [0, 0], sizes = [16, 32], strides = [1, 1]} : vector<16x128xbf16> to vector<16x32xbf16>
    %28 = vector.extract_strided_slice %25 {offsets = [0, 0], sizes = [16, 32], strides = [1, 1]} : vector<16x128xbf16> to vector<16x32xbf16>
    %29 = vector.extract_strided_slice %26 {offsets = [0, 0], sizes = [16, 32], strides = [1, 1]} : vector<16x128xbf16> to vector<16x32xbf16>
    %cst_22 = arith.constant dense<0.000000e+00> : vector<16x16xf32>
    %30 = tpu.matmul %27, %28, %cst_22 {dimension_numbers = #tpu.dot_dimension_numbers<[1], [1], [0], [0], [0, 0, 1, 0], [], []>} : vector<16x32xbf16>, vector<16x32xbf16>, vector<16x16xf32> -> vector<16x16xf32>
    %cst_23 = arith.constant dense<0xFF800000> : vector<16xf32>
    %31 = vector.multi_reduction <maximumf>, %30, %cst_23 [1] : vector<16x16xf32> to vector<16xf32>
    %32 = vector.shape_cast %31 : vector<16xf32> to vector<16x1xf32>
    %33 = vector.broadcast %32 : vector<16x1xf32> to vector<16x16xf32>
    %34 = arith.subf %30, %33 : vector<16x16xf32>
    %35 = math.exp %34 : vector<16x16xf32>
    %cst_24 = arith.constant dense<0.000000e+00> : vector<16xf32>
    %36 = vector.multi_reduction <add>, %35, %cst_24 [1] : vector<16x16xf32> to vector<16xf32>
    %37 = vector.shape_cast %36 : vector<16xf32> to vector<16x1xf32>
    %38 = tpu.reciprocal %37 {approx = true} : vector<16x1xf32> -> vector<16x1xf32>
    %39 = vector.broadcast %38 : vector<16x1xf32> to vector<16x16xf32>
    %40 = arith.mulf %35, %39 : vector<16x16xf32>
    %41 = arith.truncf %40 : vector<16x16xf32> to vector<16x16xbf16>
    %c0_25 = arith.constant 0 : index
    %c0_26 = arith.constant 0 : index
    %c0_27 = arith.constant 0 : index
    %c0_28 = arith.constant 0 : index
    %42 = vector.load %arg15[%c0_25, %c0_26, %c0_27, %c0_28] : memref<1x4x16x16xbf16, #tpu.memory_space<vmem>>, vector<1x1x16x16xbf16>
    %43 = vector.shape_cast %42 : vector<1x1x16x16xbf16> to vector<16x16xbf16>
    %44 = vector.shape_cast %41 : vector<16x16xbf16> to vector<1x1x16x16xbf16>
    tpu.vector_store %arg15[%c0_25, %c0_26, %c0_27, %c0_28], %44 {strides = array<i32>} : memref<1x4x16x16xbf16, #tpu.memory_space<vmem>>, vector<1x1x16x16xbf16>,
    %45 = arith.truncf %40 : vector<16x16xf32> to vector<16x16xbf16>
    %cst_29 = arith.constant dense<0.000000e+00> : vector<16x32xf32>
    %46 = tpu.matmul %45, %29, %cst_29 {dimension_numbers = #tpu.dot_dimension_numbers<[1], [0], [0], [1], [0, 0, 1, 1], [], []>} : vector<16x16xbf16>, vector<16x32xbf16>, vector<16x32xf32> -> vector<16x32xf32>
    %47 = vector.extract_strided_slice %24 {offsets = [0, 32], sizes = [16, 32], strides = [1, 1]} : vector<16x128xbf16> to vector<16x32xbf16>
    %48 = vector.extract_strided_slice %25 {offsets = [0, 32], sizes = [16, 32], strides = [1, 1]} : vector<16x128xbf16> to vector<16x32xbf16>
    %49 = vector.extract_strided_slice %26 {offsets = [0, 32], sizes = [16, 32], strides = [1, 1]} : vector<16x128xbf16> to vector<16x32xbf16>
    %cst_30 = arith.constant dense<0.000000e+00> : vector<16x16xf32>
    %50 = tpu.matmul %47, %48, %cst_30 {dimension_numbers = #tpu.dot_dimension_numbers<[1], [1], [0], [0], [0, 0, 1, 0], [], []>} : vector<16x32xbf16>, vector<16x32xbf16>, vector<16x16xf32> -> vector<16x16xf32>
    %cst_31 = arith.constant dense<0xFF800000> : vector<16xf32>
    %51 = vector.multi_reduction <maximumf>, %50, %cst_31 [1] : vector<16x16xf32> to vector<16xf32>
    %52 = vector.shape_cast %51 : vector<16xf32> to vector<16x1xf32>
    %53 = vector.broadcast %52 : vector<16x1xf32> to vector<16x16xf32>
    %54 = arith.subf %50, %53 : vector<16x16xf32>
    %55 = math.exp %54 : vector<16x16xf32>
    %cst_32 = arith.constant dense<0.000000e+00> : vector<16xf32>
    %56 = vector.multi_reduction <add>, %55, %cst_32 [1] : vector<16x16xf32> to vector<16xf32>
    %57 = vector.shape_cast %56 : vector<16xf32> to vector<16x1xf32>
    %58 = tpu.reciprocal %57 {approx = true} : vector<16x1xf32> -> vector<16x1xf32>
    %59 = vector.broadcast %58 : vector<16x1xf32> to vector<16x16xf32>
    %60 = arith.mulf %55, %59 : vector<16x16xf32>
    %61 = arith.truncf %60 : vector<16x16xf32> to vector<16x16xbf16>
    %c0_33 = arith.constant 0 : index
    %c1_34 = arith.constant 1 : index
    %c0_35 = arith.constant 0 : index
    %c0_36 = arith.constant 0 : index
    %62 = vector.load %arg15[%c0_33, %c1_34, %c0_35, %c0_36] : memref<1x4x16x16xbf16, #tpu.memory_space<vmem>>, vector<1x1x16x16xbf16>
    %63 = vector.shape_cast %62 : vector<1x1x16x16xbf16> to vector<16x16xbf16>
    %64 = vector.shape_cast %61 : vector<16x16xbf16> to vector<1x1x16x16xbf16>
    tpu.vector_store %arg15[%c0_33, %c1_34, %c0_35, %c0_36], %64 {strides = array<i32>} : memref<1x4x16x16xbf16, #tpu.memory_space<vmem>>, vector<1x1x16x16xbf16>,
    %65 = arith.truncf %60 : vector<16x16xf32> to vector<16x16xbf16>
    %cst_37 = arith.constant dense<0.000000e+00> : vector<16x32xf32>
    %66 = tpu.matmul %65, %49, %cst_37 {dimension_numbers = #tpu.dot_dimension_numbers<[1], [0], [0], [1], [0, 0, 1, 1], [], []>} : vector<16x16xbf16>, vector<16x32xbf16>, vector<16x32xf32> -> vector<16x32xf32>
    %67 = vector.extract_strided_slice %24 {offsets = [0, 64], sizes = [16, 32], strides = [1, 1]} : vector<16x128xbf16> to vector<16x32xbf16>
    %68 = vector.extract_strided_slice %25 {offsets = [0, 64], sizes = [16, 32], strides = [1, 1]} : vector<16x128xbf16> to vector<16x32xbf16>
    %69 = vector.extract_strided_slice %26 {offsets = [0, 64], sizes = [16, 32], strides = [1, 1]} : vector<16x128xbf16> to vector<16x32xbf16>
    %cst_38 = arith.constant dense<0.000000e+00> : vector<16x16xf32>
    %70 = tpu.matmul %67, %68, %cst_38 {dimension_numbers = #tpu.dot_dimension_numbers<[1], [1], [0], [0], [0, 0, 1, 0], [], []>} : vector<16x32xbf16>, vector<16x32xbf16>, vector<16x16xf32> -> vector<16x16xf32>
    %cst_39 = arith.constant dense<0xFF800000> : vector<16xf32>
    %71 = vector.multi_reduction <maximumf>, %70, %cst_39 [1] : vector<16x16xf32> to vector<16xf32>
    %72 = vector.shape_cast %71 : vector<16xf32> to vector<16x1xf32>
    %73 = vector.broadcast %72 : vector<16x1xf32> to vector<16x16xf32>
    %74 = arith.subf %70, %73 : vector<16x16xf32>
    %75 = math.exp %74 : vector<16x16xf32>
    %cst_40 = arith.constant dense<0.000000e+00> : vector<16xf32>
    %76 = vector.multi_reduction <add>, %75, %cst_40 [1] : vector<16x16xf32> to vector<16xf32>
    %77 = vector.shape_cast %76 : vector<16xf32> to vector<16x1xf32>
    %78 = tpu.reciprocal %77 {approx = true} : vector<16x1xf32> -> vector<16x1xf32>
    %79 = vector.broadcast %78 : vector<16x1xf32> to vector<16x16xf32>
    %80 = arith.mulf %75, %79 : vector<16x16xf32>
    %81 = arith.truncf %80 : vector<16x16xf32> to vector<16x16xbf16>
    %c0_41 = arith.constant 0 : index
    %c2_42 = arith.constant 2 : index
    %c0_43 = arith.constant 0 : index
    %c0_44 = arith.constant 0 : index
    %82 = vector.load %arg15[%c0_41, %c2_42, %c0_43, %c0_44] : memref<1x4x16x16xbf16, #tpu.memory_space<vmem>>, vector<1x1x16x16xbf16>
    %83 = vector.shape_cast %82 : vector<1x1x16x16xbf16> to vector<16x16xbf16>
    %84 = vector.shape_cast %81 : vector<16x16xbf16> to vector<1x1x16x16xbf16>
    tpu.vector_store %arg15[%c0_41, %c2_42, %c0_43, %c0_44], %84 {strides = array<i32>} : memref<1x4x16x16xbf16, #tpu.memory_space<vmem>>, vector<1x1x16x16xbf16>,
    %85 = arith.truncf %80 : vector<16x16xf32> to vector<16x16xbf16>
    %cst_45 = arith.constant dense<0.000000e+00> : vector<16x32xf32>
    %86 = tpu.matmul %85, %69, %cst_45 {dimension_numbers = #tpu.dot_dimension_numbers<[1], [0], [0], [1], [0, 0, 1, 1], [], []>} : vector<16x16xbf16>, vector<16x32xbf16>, vector<16x32xf32> -> vector<16x32xf32>
    %87 = vector.extract_strided_slice %24 {offsets = [0, 96], sizes = [16, 32], strides = [1, 1]} : vector<16x128xbf16> to vector<16x32xbf16>
    %88 = vector.extract_strided_slice %25 {offsets = [0, 96], sizes = [16, 32], strides = [1, 1]} : vector<16x128xbf16> to vector<16x32xbf16>
    %89 = vector.extract_strided_slice %26 {offsets = [0, 96], sizes = [16, 32], strides = [1, 1]} : vector<16x128xbf16> to vector<16x32xbf16>
    %cst_46 = arith.constant dense<0.000000e+00> : vector<16x16xf32>
    %90 = tpu.matmul %87, %88, %cst_46 {dimension_numbers = #tpu.dot_dimension_numbers<[1], [1], [0], [0], [0, 0, 1, 0], [], []>} : vector<16x32xbf16>, vector<16x32xbf16>, vector<16x16xf32> -> vector<16x16xf32>
    %cst_47 = arith.constant dense<0xFF800000> : vector<16xf32>
    %91 = vector.multi_reduction <maximumf>, %90, %cst_47 [1] : vector<16x16xf32> to vector<16xf32>
    %92 = vector.shape_cast %91 : vector<16xf32> to vector<16x1xf32>
    %93 = vector.broadcast %92 : vector<16x1xf32> to vector<16x16xf32>
    %94 = arith.subf %90, %93 : vector<16x16xf32>
    %95 = math.exp %94 : vector<16x16xf32>
    %cst_48 = arith.constant dense<0.000000e+00> : vector<16xf32>
    %96 = vector.multi_reduction <add>, %95, %cst_48 [1] : vector<16x16xf32> to vector<16xf32>
    %97 = vector.shape_cast %96 : vector<16xf32> to vector<16x1xf32>
    %98 = tpu.reciprocal %97 {approx = true} : vector<16x1xf32> -> vector<16x1xf32>
    %99 = vector.broadcast %98 : vector<16x1xf32> to vector<16x16xf32>
    %100 = arith.mulf %95, %99 : vector<16x16xf32>
    %101 = arith.truncf %100 : vector<16x16xf32> to vector<16x16xbf16>
    %c0_49 = arith.constant 0 : index
    %c3_50 = arith.constant 3 : index
    %c0_51 = arith.constant 0 : index
    %c0_52 = arith.constant 0 : index
    %102 = vector.load %arg15[%c0_49, %c3_50, %c0_51, %c0_52] : memref<1x4x16x16xbf16, #tpu.memory_space<vmem>>, vector<1x1x16x16xbf16>
    %103 = vector.shape_cast %102 : vector<1x1x16x16xbf16> to vector<16x16xbf16>
    %104 = vector.shape_cast %101 : vector<16x16xbf16> to vector<1x1x16x16xbf16>
    tpu.vector_store %arg15[%c0_49, %c3_50, %c0_51, %c0_52], %104 {strides = array<i32>} : memref<1x4x16x16xbf16, #tpu.memory_space<vmem>>, vector<1x1x16x16xbf16>,
    %105 = arith.truncf %100 : vector<16x16xf32> to vector<16x16xbf16>
    %cst_53 = arith.constant dense<0.000000e+00> : vector<16x32xf32>
    %106 = tpu.matmul %105, %89, %cst_53 {dimension_numbers = #tpu.dot_dimension_numbers<[1], [0], [0], [1], [0, 0, 1, 1], [], []>} : vector<16x16xbf16>, vector<16x32xbf16>, vector<16x32xf32> -> vector<16x32xf32>
    %107 = tpu.concatenate %46, %66, %86, %106 in 1 : vector<16x32xf32>, vector<16x32xf32>, vector<16x32xf32>, vector<16x32xf32> -> vector<16x128xf32>
    %108 = arith.truncf %107 : vector<16x128xf32> to vector<16x128xbf16>
    %c0_54 = arith.constant 0 : index
    %c0_55 = arith.constant 0 : index
    %109 = vector.load %arg8[%c0_54, %c0_55] : memref<128x128xbf16, #tpu.memory_space<vmem>>, vector<128x128xbf16>
    %cst_56 = arith.constant dense<0.000000e+00> : vector<16x128xf32>
    %110 = tpu.matmul %108, %109, %cst_56 {dimension_numbers = #tpu.dot_dimension_numbers<[1], [0], [0], [1], [0, 0, 1, 1], [], []>} : vector<16x128xbf16>, vector<128x128xbf16>, vector<16x128xf32> -> vector<16x128xf32>
    %111 = vector.broadcast %9 : vector<1x128xf32> to vector<16x128xf32>
    %112 = arith.addf %110, %111 : vector<16x128xf32>
    %113 = arith.addf %112, %1 : vector<16x128xf32>
    %c0_57 = arith.constant 0 : index
    %c0_58 = arith.constant 0 : index
    %114 = vector.load %arg13[%c0_57, %c0_58] : memref<4x128xf32, #tpu.memory_space<vmem>>, vector<1x128xf32>
    %c1_59 = arith.constant 1 : index
    %c0_60 = arith.constant 0 : index
    %115 = vector.load %arg13[%c1_59, %c0_60] : memref<4x128xf32, #tpu.memory_space<vmem>>, vector<1x128xf32>
    %cst_61 = arith.constant dense<0.000000e+00> : vector<16xf32>
    %116 = vector.multi_reduction <add>, %113, %cst_61 [1] : vector<16x128xf32> to vector<16xf32>
    %117 = vector.shape_cast %116 : vector<16xf32> to vector<16x1xf32>
    %cst_62 = arith.constant 1.280000e+02 : f32
    %118 = vector.broadcast %cst_62 : f32 to vector<16x1xf32>
    %119 = arith.divf %117, %118 : vector<16x1xf32>
    %120 = vector.broadcast %119 : vector<16x1xf32> to vector<16x128xf32>
    %121 = arith.subf %113, %120 : vector<16x128xf32>
    %122 = arith.mulf %121, %121 : vector<16x128xf32>
    %cst_63 = arith.constant dense<0.000000e+00> : vector<16xf32>
    %123 = vector.multi_reduction <add>, %122, %cst_63 [1] : vector<16x128xf32> to vector<16xf32>
    %124 = vector.shape_cast %123 : vector<16xf32> to vector<16x1xf32>
    %cst_64 = arith.constant 1.280000e+02 : f32
    %125 = vector.broadcast %cst_64 : f32 to vector<16x1xf32>
    %126 = arith.divf %124, %125 : vector<16x1xf32>
    %127 = vector.broadcast %119 : vector<16x1xf32> to vector<16x128xf32>
    %128 = arith.subf %113, %127 : vector<16x128xf32>
    %cst_65 = arith.constant 9.99999974E-6 : f32
    %129 = vector.broadcast %cst_65 : f32 to vector<16x1xf32>
    %130 = arith.addf %126, %129 : vector<16x1xf32>
    %131 = math.rsqrt %130 : vector<16x1xf32>
    %132 = vector.broadcast %131 : vector<16x1xf32> to vector<16x128xf32>
    %133 = arith.mulf %128, %132 : vector<16x128xf32>
    %134 = vector.broadcast %114 : vector<1x128xf32> to vector<16x128xf32>
    %135 = arith.mulf %133, %134 : vector<16x128xf32>
    %136 = vector.broadcast %115 : vector<1x128xf32> to vector<16x128xf32>
    %137 = arith.addf %135, %136 : vector<16x128xf32>
    %138 = arith.truncf %137 : vector<16x128xf32> to vector<16x128xbf16>
    %cst_66 = arith.constant 0.000000e+00 : f32
    %139 = vector.broadcast %cst_66 : f32 to vector<16x128xf32>
    %c0_67 = arith.constant 0 : index
    %c0_68 = arith.constant 0 : index
    %140 = vector.load %arg9[%c0_67, %c0_68] : memref<128x256xbf16, #tpu.memory_space<vmem>>, vector<128x256xbf16>
    %cst_69 = arith.constant dense<0.000000e+00> : vector<16x256xf32>
    %141 = tpu.matmul %138, %140, %cst_69 {dimension_numbers = #tpu.dot_dimension_numbers<[1], [0], [0], [1], [0, 0, 1, 1], [], []>} : vector<16x128xbf16>, vector<128x256xbf16>, vector<16x256xf32> -> vector<16x256xf32>
    %c0_70 = arith.constant 0 : index
    %c0_71 = arith.constant 0 : index
    %142 = vector.load %arg11[%c0_70, %c0_71] : memref<1x256xf32, #tpu.memory_space<vmem>>, vector<1x256xf32>
    %143 = vector.broadcast %142 : vector<1x256xf32> to vector<16x256xf32>
    %144 = arith.addf %141, %143 : vector<16x256xf32>
    %cst_72 = arith.constant 0.000000e+00 : f32
    %145 = vector.broadcast %cst_72 : f32 to vector<16x256xf32>
    %146 = arith.maximumf %144, %145 : vector<16x256xf32>
    %147 = arith.truncf %146 : vector<16x256xf32> to vector<16x256xbf16>
    %c0_73 = arith.constant 0 : index
    %c0_74 = arith.constant 0 : index
    %148 = vector.load %arg10[%c0_73, %c0_74] : memref<256x128xbf16, #tpu.memory_space<vmem>>, vector<256x128xbf16>
    %cst_75 = arith.constant dense<0.000000e+00> : vector<16x128xf32>
    %149 = tpu.matmul %147, %148, %cst_75 {dimension_numbers = #tpu.dot_dimension_numbers<[1], [0], [0], [1], [0, 0, 1, 1], [], []>} : vector<16x256xbf16>, vector<256x128xbf16>, vector<16x128xf32> -> vector<16x128xf32>
    %150 = arith.addf %139, %149 : vector<16x128xf32>
    %151 = vector.broadcast %10 : vector<1x128xf32> to vector<16x128xf32>
    %152 = arith.addf %150, %151 : vector<16x128xf32>
    %153 = arith.addf %152, %137 : vector<16x128xf32>
    %c2_76 = arith.constant 2 : index
    %c0_77 = arith.constant 0 : index
    %154 = vector.load %arg13[%c2_76, %c0_77] : memref<4x128xf32, #tpu.memory_space<vmem>>, vector<1x128xf32>
    %c3_78 = arith.constant 3 : index
    %c0_79 = arith.constant 0 : index
    %155 = vector.load %arg13[%c3_78, %c0_79] : memref<4x128xf32, #tpu.memory_space<vmem>>, vector<1x128xf32>
    %cst_80 = arith.constant dense<0.000000e+00> : vector<16xf32>
    %156 = vector.multi_reduction <add>, %153, %cst_80 [1] : vector<16x128xf32> to vector<16xf32>
    %157 = vector.shape_cast %156 : vector<16xf32> to vector<16x1xf32>
    %cst_81 = arith.constant 1.280000e+02 : f32
    %158 = vector.broadcast %cst_81 : f32 to vector<16x1xf32>
    %159 = arith.divf %157, %158 : vector<16x1xf32>
    %160 = vector.broadcast %159 : vector<16x1xf32> to vector<16x128xf32>
    %161 = arith.subf %153, %160 : vector<16x128xf32>
    %162 = arith.mulf %161, %161 : vector<16x128xf32>
    %cst_82 = arith.constant dense<0.000000e+00> : vector<16xf32>
    %163 = vector.multi_reduction <add>, %162, %cst_82 [1] : vector<16x128xf32> to vector<16xf32>
    %164 = vector.shape_cast %163 : vector<16xf32> to vector<16x1xf32>
    %cst_83 = arith.constant 1.280000e+02 : f32
    %165 = vector.broadcast %cst_83 : f32 to vector<16x1xf32>
    %166 = arith.divf %164, %165 : vector<16x1xf32>
    %167 = vector.broadcast %159 : vector<16x1xf32> to vector<16x128xf32>
    %168 = arith.subf %153, %167 : vector<16x128xf32>
    %cst_84 = arith.constant 9.99999974E-6 : f32
    %169 = vector.broadcast %cst_84 : f32 to vector<16x1xf32>
    %170 = arith.addf %166, %169 : vector<16x1xf32>
    %171 = math.rsqrt %170 : vector<16x1xf32>
    %172 = vector.broadcast %171 : vector<16x1xf32> to vector<16x128xf32>
    %173 = arith.mulf %168, %172 : vector<16x128xf32>
    %174 = vector.broadcast %154 : vector<1x128xf32> to vector<16x128xf32>
    %175 = arith.mulf %173, %174 : vector<16x128xf32>
    %176 = vector.broadcast %155 : vector<1x128xf32> to vector<16x128xf32>
    %177 = arith.addf %175, %176 : vector<16x128xf32>
    %c0_85 = arith.constant 0 : index
    %c0_86 = arith.constant 0 : index
    %c0_87 = arith.constant 0 : index
    %178 = vector.load %arg14[%c0_85, %c0_86, %c0_87] : memref<1x16x128xf32, #tpu.memory_space<vmem>>, vector<1x16x128xf32>
    %179 = vector.shape_cast %178 : vector<1x16x128xf32> to vector<16x128xf32>
    %180 = vector.shape_cast %177 : vector<16x128xf32> to vector<1x16x128xf32>
    tpu.vector_store %arg14[%c0_85, %c0_86, %c0_87], %180 {strides = array<i32>} : memref<1x16x128xf32, #tpu.memory_space<vmem>>, vector<1x16x128xf32>,
    return
  }
  func.func @transform_0(%arg0: i32, %arg1: i32) -> (i32, i32, i32) {
    %c0_i32 = arith.constant 0 : i32
    %c0_i32_0 = arith.constant 0 : i32
    return %arg0, %arg1, %c0_i32 : i32, i32, i32
  }
  func.func @transform_1(%arg0: i32, %arg1: i32) -> (i32, i32, i32) {
    %c0_i32 = arith.constant 0 : i32
    %c0_i32_0 = arith.constant 0 : i32
    %c0_i32_1 = arith.constant 0 : i32
    return %arg0, %c0_i32, %c0_i32_0 : i32, i32, i32
  }
  func.func @transform_2(%arg0: i32, %arg1: i32) -> (i32, i32, i32) {
    %c0_i32 = arith.constant 0 : i32
    %c0_i32_0 = arith.constant 0 : i32
    %c0_i32_1 = arith.constant 0 : i32
    return %arg0, %c0_i32, %c0_i32_0 : i32, i32, i32
  }
  func.func @transform_3(%arg0: i32, %arg1: i32) -> (i32, i32) {
    %c0_i32 = arith.constant 0 : i32
    %c0_i32_0 = arith.constant 0 : i32
    %c0_i32_1 = arith.constant 0 : i32
    return %c0_i32, %c0_i32_0 : i32, i32
  }
  func.func @transform_4(%arg0: i32, %arg1: i32) -> (i32, i32) {
    %c0_i32 = arith.constant 0 : i32
    %c0_i32_0 = arith.constant 0 : i32
    %c0_i32_1 = arith.constant 0 : i32
    return %c0_i32, %c0_i32_0 : i32, i32
  }
  func.func @transform_5(%arg0: i32, %arg1: i32) -> (i32, i32) {
    %c0_i32 = arith.constant 0 : i32
    %c0_i32_0 = arith.constant 0 : i32
    %c0_i32_1 = arith.constant 0 : i32
    return %c0_i32, %c0_i32_0 : i32, i32
  }
  func.func @transform_6(%arg0: i32, %arg1: i32) -> (i32, i32) {
    %c0_i32 = arith.constant 0 : i32
    %c0_i32_0 = arith.constant 0 : i32
    %c0_i32_1 = arith.constant 0 : i32
    return %c0_i32, %c0_i32_0 : i32, i32
  }
  func.func @transform_7(%arg0: i32, %arg1: i32) -> (i32, i32) {
    %c0_i32 = arith.constant 0 : i32
    %c0_i32_0 = arith.constant 0 : i32
    %c0_i32_1 = arith.constant 0 : i32
    return %c0_i32, %c0_i32_0 : i32, i32
  }
  func.func @transform_8(%arg0: i32, %arg1: i32) -> (i32, i32) {
    %c0_i32 = arith.constant 0 : i32
    %c0_i32_0 = arith.constant 0 : i32
    %c0_i32_1 = arith.constant 0 : i32
    return %c0_i32, %c0_i32_0 : i32, i32
  }
  func.func @transform_9(%arg0: i32, %arg1: i32) -> (i32, i32) {
    %c0_i32 = arith.constant 0 : i32
    %c0_i32_0 = arith.constant 0 : i32
    %c0_i32_1 = arith.constant 0 : i32
    return %c0_i32, %c0_i32_0 : i32, i32
  }
  func.func @transform_10(%arg0: i32, %arg1: i32) -> (i32, i32) {
    %c0_i32 = arith.constant 0 : i32
    %c0_i32_0 = arith.constant 0 : i32
    %c0_i32_1 = arith.constant 0 : i32
    return %c0_i32, %c0_i32_0 : i32, i32
  }
  func.func @transform_11(%arg0: i32, %arg1: i32) -> (i32, i32) {
    %c0_i32 = arith.constant 0 : i32
    %c0_i32_0 = arith.constant 0 : i32
    %c0_i32_1 = arith.constant 0 : i32
    return %c0_i32, %c0_i32_0 : i32, i32
  }
  func.func @transform_12(%arg0: i32, %arg1: i32) -> (i32, i32, i32) {
    %c0_i32 = arith.constant 0 : i32
    %c0_i32_0 = arith.constant 0 : i32
    return %arg0, %arg1, %c0_i32 : i32, i32, i32
  }
  func.func @transform_13(%arg0: i32, %arg1: i32) -> (i32, i32, i32, i32) {
    %c0_i32 = arith.constant 0 : i32
    %c0_i32_0 = arith.constant 0 : i32
    %c0_i32_1 = arith.constant 0 : i32
    return %arg0, %c0_i32, %arg1, %c0_i32_0 : i32, i32, i32, i32
  }
}

</mosaic_0001>

<llo_original>
// kernel: tpu_custom_call.1
$region0: #{tpu_custom_call.1}
  #allocation0 [shape = 'u32[]', space=smem, size = 0x4, offset = 0x4, fixed_abs, tag = 'smem constant byte address 0x4 - core index']
  #allocation1 [shape = 'u32[144,128]{1,0:T(1,128)}', space=vmem, size = 0x12000, scoped, tag = 'internal scratch']
  %s0 = inlined_call_operand.hbm [shape: f32[2,16,128], index: 0, kind: input, shape index: {}]
  %s1 = inlined_call_operand.hbm [shape: bf16[2,16,128], index: 1, kind: input, shape index: {}]
  %s2 = inlined_call_operand.hbm [shape: bf16[2,16,128], index: 2, kind: input, shape index: {}]
  %s3 = inlined_call_operand.hbm [shape: bf16[128,128], index: 3, kind: input, shape index: {}]
  %s4 = inlined_call_operand.hbm [shape: bf16[128,128], index: 4, kind: input, shape index: {}]
  %s5 = inlined_call_operand.hbm [shape: bf16[128,128], index: 5, kind: input, shape index: {}]
  %s6 = inlined_call_operand.hbm [shape: bf16[128,128], index: 6, kind: input, shape index: {}]
  %s7 = inlined_call_operand.hbm [shape: bf16[128,256], index: 7, kind: input, shape index: {}]
  %s8 = inlined_call_operand.hbm [shape: bf16[256,128], index: 8, kind: input, shape index: {}]
  %s9 = inlined_call_operand.vmem [shape: f32[1,256], index: 9, kind: input, shape index: {}]
  %s10 = inlined_call_operand.vmem [shape: f32[5,128], index: 10, kind: input, shape index: {}]
  %s11 = inlined_call_operand.vmem [shape: f32[4,128], index: 11, kind: input, shape index: {}]
  %s12 = inlined_call_operand.hbm [shape: f32[2,16,128], index: 12, kind: output, shape index: {0}]
  %s13 = inlined_call_operand.hbm [shape: bf16[2,4,16,16], index: 13, kind: output, shape index: {1}]
  %14 = xla_tuple %s12, %s13
  %s15 = sld [smem:[#allocation0]]
  $region125: #{tpu_custom_call.1} parent=0
    _
  %s17 = ssub.s32 1, %s15
  %s18 = scalar_select 0, %s17, %s15
  $region1: #{tpu_custom_call.1} parent=0
    #allocation2 [shape = 'u8[16384]{0}', space=vmem, size = 0x4000, scoped, tag = 'input window, operand 0']
    #allocation3 [shape = 's32[2]{0}', space=sflag, size = 0x8, scoped, tag = 'scoped memory for tpu_custom_call.1']
    #allocation4 [shape = 's32[2]{0}', space=sflag, size = 0x8, scoped, tag = 'scoped memory for tpu_custom_call.1']
    #allocation5 [shape = 'u8[8192]{0}', space=vmem, size = 0x2000, scoped, tag = 'input window, operand 1']
    #allocation6 [shape = 's32[2]{0}', space=sflag, size = 0x8, scoped, tag = 'scoped memory for tpu_custom_call.1']
    #allocation7 [shape = 'u8[8192]{0}', space=vmem, size = 0x2000, scoped, tag = 'input window, operand 2']
    #allocation8 [shape = 'u8[32768]{0}', space=vmem, size = 0x8000, scoped, tag = 'input window, operand 3, single buffered']
    #allocation9 [shape = 's32[1]{0}', space=sflag, size = 0x4, scoped, tag = 'scoped memory for tpu_custom_call.1']
    #allocation10 [shape = 'u8[32768]{0}', space=vmem, size = 0x8000, scoped, tag = 'input window, operand 4, single buffered']
    #allocation11 [shape = 'u8[32768]{0}', space=vmem, size = 0x8000, scoped, tag = 'input window, operand 5, single buffered']
    #allocation12 [shape = 's32[1]{0}', space=sflag, size = 0x4, scoped, tag = 'scoped memory for tpu_custom_call.1']
    #allocation13 [shape = 'u8[32768]{0}', space=vmem, size = 0x8000, scoped, tag = 'input window, operand 6, single buffered']
    #allocation14 [shape = 'u8[65536]{0}', space=vmem, size = 0x10000, scoped, tag = 'input window, operand 7, single buffered']
    #allocation15 [shape = 's32[1]{0}', space=sflag, size = 0x4, scoped, tag = 'scoped memory for tpu_custom_call.1']
    #allocation16 [shape = 'u8[65536]{0}', space=vmem, size = 0x10000, scoped, tag = 'input window, operand 8, single buffered']
    #allocation17 [shape = 'u8[16384]{0}', space=vmem, size = 0x4000, scoped, tag = 'output window, operand 0']
    #allocation18 [shape = 'u8[32768]{0}', space=vmem, size = 0x8000, scoped, tag = 'output window, operand 1']
    #allocation19 [shape = 's32[2]{0}', space=sflag, size = 0x8, scoped, tag = 'scoped memory for tpu_custom_call.1']
    %19 = vsyncpa [#allocation3], 0
    %s20 = scalar_lea.sflag [#allocation3], 1
    %21 = vsyncpa %s20, 0
    %22 = vsyncpa [#allocation6], 0
    %s23 = scalar_lea.sflag [#allocation6], 1
    %24 = vsyncpa %s23, 0
    %25 = vsyncpa [#allocation9], 0
    %26 = vsyncpa [#allocation12], 0
    %27 = vsyncpa [#allocation15], 0
    %28 = vsyncpa [#allocation4], 0
    %s29 = scalar_lea.sflag [#allocation4], 1
    %30 = vsyncpa %s29, 0
    %31 = vsyncpa [#allocation19], 0
    %s32 = scalar_lea.sflag [#allocation19], 1
    %33 = vsyncpa %s32, 0
    loop: start=0, step=1, limit=4
    $region2: #{tpu_custom_call.1} parent=1 // loop_pre_header
      _
    $region3: #{tpu_custom_call.1} parent=1 // loop_header
      %s35 = sphi 0, %s39
      %p36 = scmp.ge.s32.totalorder %s35, 4
      %s42 = sphi 0, %s54
      %s43 = sphi 0, %s50
      %s44 = sphi 0, %s42
      %s45 = sphi 0, %s43
      %s46 = sphi 0, %s44
      %s47 = sphi 0, %s45
      %s59 = sphi 0, %s61
      %s62 = sphi 0, %s59
      %s63 = sphi 0, %s62
      %s79 = sphi 0, %s63
      %s85 = sphi 0, %s87
      %s88 = sphi 0, %s85
      %s89 = sphi 0, %s88
      %s105 = sphi 0, %s89
      %s111 = sphi 0, %s113
      %s114 = sphi 0, %s111
      %s115 = sphi 0, %s114
      %s131 = sphi 0, %s115
      %s135 = sphi 0, %s135
      %s137 = sphi 0, %s135
      %s138 = sphi 0, %s137
      %s152 = sphi 0, %s138
      %s156 = sphi 0, %s156
      %s158 = sphi 0, %s156
      %s159 = sphi 0, %s158
      %s173 = sphi 0, %s159
      %s177 = sphi 0, %s177
      %s179 = sphi 0, %s177
      %s180 = sphi 0, %s179
      %s194 = sphi 0, %s180
      %s198 = sphi 0, %s198
      %s200 = sphi 0, %s198
      %s201 = sphi 0, %s200
      %s215 = sphi 0, %s201
      %s219 = sphi 0, %s219
      %s221 = sphi 0, %s219
      %s222 = sphi 0, %s221
      %s236 = sphi 0, %s222
      %s240 = sphi 0, %s240
      %s242 = sphi 0, %s240
      %s243 = sphi 0, %s242
      %s257 = sphi 0, %s243
      %s261 = sphi 0, %s261
      %s263 = sphi 0, %s261
      %s264 = sphi 0, %s263
      %s278 = sphi 0, %s264
      %s282 = sphi 0, %s282
      %s284 = sphi 0, %s282
      %s285 = sphi 0, %s284
      %s299 = sphi 0, %s285
      %s303 = sphi 0, %s303
      %s305 = sphi 0, %s303
      %s306 = sphi 0, %s305
      %s320 = sphi 0, %s306
      %s328 = sphi 0, %s330
      %s331 = sphi 0, %s328
      %s332 = sphi 0, %s331
      %s348 = sphi 0, %s332
      %s356 = sphi 0, %s358
      %s359 = sphi 0, %s356
      %s360 = sphi 0, %s359
      %s376 = sphi 0, %s360
    $region4: #{tpu_custom_call.1} parent=1 // loop_header_branch
      %38 = sbr.rel (%p36) target = $region8
    $region5: #{tpu_custom_call.1} parent=1 // loop_body
      %s40 = ssub.s32 %s35, 1
      %s41 = ssub.s32 %s35, 2
      %s48 = sadd.s32 1, %s43
      %p49 = scmp.ge.s32.totalorder %s48, 1
      %s50 = scalar_select %p49, 0, %s48
      %s51 = sadd.s32 1, %s42
      %s52 = scalar_select %p49, %s51, %s42
      %p53 = scmp.ge.s32.totalorder %s52, 2
      %s54 = scalar_select %p53, 0, %s52
      %s55 = ssub.s32 %s42, %s54
      %s56 = ssub.s32 %s43, %s50
      %s57 = sor.u32 %s55, %s56
      %p58 = scmp.eq.s32.totalorder %s57, 0
      %s60 = sadd.s32 %s59, 1
      %s61 = scalar_select %p58, %s59, %s60
      %p64 = pneg %p58
      %p65 = scmp.eq.s32.totalorder %s35, 1
      %p66 = por %p64, %p65
      %p67 = scmp.ne.s32.totalorder %s59, %s62
      %p68 = scmp.eq.s32.totalorder %s35, 0
      %p69 = por %p67, %p68
      %p70 = scmp.ne.s32.totalorder %s59, %s62
      %p71 = scmp.eq.s32.totalorder %s40, 1
      %p72 = por %p70, %p71
      %p73 = scmp.ne.s32.totalorder %s62, %s63
      %p74 = scmp.eq.s32.totalorder %s40, 0
      %p75 = por %p73, %p74
      %p76 = scmp.ne.s32.totalorder %s62, %s63
      %p77 = scmp.eq.s32.totalorder %s41, 1
      %p78 = por %p76, %p77
      %p80 = scmp.ne.s32.totalorder %s63, %s79
      %p81 = scmp.eq.s32.totalorder %s41, 0
      %p82 = por %p80, %p81
      %s83 = ssub.s32 %s42, %s54
      %p84 = scmp.eq.s32.totalorder %s83, 0
      %s86 = sadd.s32 %s85, 1
      %s87 = scalar_select %p84, %s85, %s86
      %p90 = pneg %p84
      %p91 = scmp.eq.s32.totalorder %s35, 1
      %p92 = por %p90, %p91
      %p93 = scmp.ne.s32.totalorder %s85, %s88
      %p94 = scmp.eq.s32.totalorder %s35, 0
      %p95 = por %p93, %p94
      %p96 = scmp.ne.s32.totalorder %s85, %s88
      %p97 = scmp.eq.s32.totalorder %s40, 1
      %p98 = por %p96, %p97
      %p99 = scmp.ne.s32.totalorder %s88, %s89
      %p100 = scmp.eq.s32.totalorder %s40, 0
      %p101 = por %p99, %p100
      %p102 = scmp.ne.s32.totalorder %s88, %s89
      %p103 = scmp.eq.s32.totalorder %s41, 1
      %p104 = por %p102, %p103
      %p106 = scmp.ne.s32.totalorder %s89, %s105
      %p107 = scmp.eq.s32.totalorder %s41, 0
      %p108 = por %p106, %p107
      %s109 = ssub.s32 %s42, %s54
      %p110 = scmp.eq.s32.totalorder %s109, 0
      %s112 = sadd.s32 %s111, 1
      %s113 = scalar_select %p110, %s111, %s112
      %p116 = pneg %p110
      %p117 = scmp.eq.s32.totalorder %s35, 1
      %p118 = por %p116, %p117
      %p119 = scmp.ne.s32.totalorder %s111, %s114
      %p120 = scmp.eq.s32.totalorder %s35, 0
      %p121 = por %p119, %p120
      %p122 = scmp.ne.s32.totalorder %s111, %s114
      %p123 = scmp.eq.s32.totalorder %s40, 1
      %p124 = por %p122, %p123
      %p125 = scmp.ne.s32.totalorder %s114, %s115
      %p126 = scmp.eq.s32.totalorder %s40, 0
      %p127 = por %p125, %p126
      %p128 = scmp.ne.s32.totalorder %s114, %s115
      %p129 = scmp.eq.s32.totalorder %s41, 1
      %p130 = por %p128, %p129
      %p132 = scmp.ne.s32.totalorder %s115, %s131
      %p133 = scmp.eq.s32.totalorder %s41, 0
      %p134 = por %p132, %p133
      %s136 = sadd.s32 %s135, 1
      %p139 = scmp.eq.s32.totalorder %s35, 1
      %p140 = scmp.ne.s32.totalorder %s135, %s137
      %p141 = scmp.eq.s32.totalorder %s35, 0
      %p142 = por %p140, %p141
      %p143 = scmp.ne.s32.totalorder %s135, %s137
      %p144 = scmp.eq.s32.totalorder %s40, 1
      %p145 = por %p143, %p144
      %p146 = scmp.ne.s32.totalorder %s137, %s138
      %p147 = scmp.eq.s32.totalorder %s40, 0
      %p148 = por %p146, %p147
      %p149 = scmp.ne.s32.totalorder %s137, %s138
      %p150 = scmp.eq.s32.totalorder %s41, 1
      %p151 = por %p149, %p150
      %p153 = scmp.ne.s32.totalorder %s138, %s152
      %p154 = scmp.eq.s32.totalorder %s41, 0
      %p155 = por %p153, %p154
      %s157 = sadd.s32 %s156, 1
      %p160 = scmp.eq.s32.totalorder %s35, 1
      %p161 = scmp.ne.s32.totalorder %s156, %s158
      %p162 = scmp.eq.s32.totalorder %s35, 0
      %p163 = por %p161, %p162
      %p164 = scmp.ne.s32.totalorder %s156, %s158
      %p165 = scmp.eq.s32.totalorder %s40, 1
      %p166 = por %p164, %p165
      %p167 = scmp.ne.s32.totalorder %s158, %s159
      %p168 = scmp.eq.s32.totalorder %s40, 0
      %p169 = por %p167, %p168
      %p170 = scmp.ne.s32.totalorder %s158, %s159
      %p171 = scmp.eq.s32.totalorder %s41, 1
      %p172 = por %p170, %p171
      %p174 = scmp.ne.s32.totalorder %s159, %s173
      %p175 = scmp.eq.s32.totalorder %s41, 0
      %p176 = por %p174, %p175
      %s178 = sadd.s32 %s177, 1
      %p181 = scmp.eq.s32.totalorder %s35, 1
      %p182 = scmp.ne.s32.totalorder %s177, %s179
      %p183 = scmp.eq.s32.totalorder %s35, 0
      %p184 = por %p182, %p183
      %p185 = scmp.ne.s32.totalorder %s177, %s179
      %p186 = scmp.eq.s32.totalorder %s40, 1
      %p187 = por %p185, %p186
      %p188 = scmp.ne.s32.totalorder %s179, %s180
      %p189 = scmp.eq.s32.totalorder %s40, 0
      %p190 = por %p188, %p189
      %p191 = scmp.ne.s32.totalorder %s179, %s180
      %p192 = scmp.eq.s32.totalorder %s41, 1
      %p193 = por %p191, %p192
      %p195 = scmp.ne.s32.totalorder %s180, %s194
      %p196 = scmp.eq.s32.totalorder %s41, 0
      %p197 = por %p195, %p196
      %s199 = sadd.s32 %s198, 1
      %p202 = scmp.eq.s32.totalorder %s35, 1
      %p203 = scmp.ne.s32.totalorder %s198, %s200
      %p204 = scmp.eq.s32.totalorder %s35, 0
      %p205 = por %p203, %p204
      %p206 = scmp.ne.s32.totalorder %s198, %s200
      %p207 = scmp.eq.s32.totalorder %s40, 1
      %p208 = por %p206, %p207
      %p209 = scmp.ne.s32.totalorder %s200, %s201
      %p210 = scmp.eq.s32.totalorder %s40, 0
      %p211 = por %p209, %p210
      %p212 = scmp.ne.s32.totalorder %s200, %s201
      %p213 = scmp.eq.s32.totalorder %s41, 1
      %p214 = por %p212, %p213
      %p216 = scmp.ne.s32.totalorder %s201, %s215
      %p217 = scmp.eq.s32.totalorder %s41, 0
      %p218 = por %p216, %p217
      %s220 = sadd.s32 %s219, 1
      %p223 = scmp.eq.s32.totalorder %s35, 1
      %p224 = scmp.ne.s32.totalorder %s219, %s221
      %p225 = scmp.eq.s32.totalorder %s35, 0
      %p226 = por %p224, %p225
      %p227 = scmp.ne.s32.totalorder %s219, %s221
      %p228 = scmp.eq.s32.totalorder %s40, 1
      %p229 = por %p227, %p228
      %p230 = scmp.ne.s32.totalorder %s221, %s222
      %p231 = scmp.eq.s32.totalorder %s40, 0
      %p232 = por %p230, %p231
      %p233 = scmp.ne.s32.totalorder %s221, %s222
      %p234 = scmp.eq.s32.totalorder %s41, 1
      %p235 = por %p233, %p234
      %p237 = scmp.ne.s32.totalorder %s222, %s236
      %p238 = scmp.eq.s32.totalorder %s41, 0
      %p239 = por %p237, %p238
      %s241 = sadd.s32 %s240, 1
      %p244 = scmp.eq.s32.totalorder %s35, 1
      %p245 = scmp.ne.s32.totalorder %s240, %s242
      %p246 = scmp.eq.s32.totalorder %s35, 0
      %p247 = por %p245, %p246
      %p248 = scmp.ne.s32.totalorder %s240, %s242
      %p249 = scmp.eq.s32.totalorder %s40, 1
      %p250 = por %p248, %p249
      %p251 = scmp.ne.s32.totalorder %s242, %s243
      %p252 = scmp.eq.s32.totalorder %s40, 0
      %p253 = por %p251, %p252
      %p254 = scmp.ne.s32.totalorder %s242, %s243
      %p255 = scmp.eq.s32.totalorder %s41, 1
      %p256 = por %p254, %p255
      %p258 = scmp.ne.s32.totalorder %s243, %s257
      %p259 = scmp.eq.s32.totalorder %s41, 0
      %p260 = por %p258, %p259
      %s262 = sadd.s32 %s261, 1
      %p265 = scmp.eq.s32.totalorder %s35, 1
      %p266 = scmp.ne.s32.totalorder %s261, %s263
      %p267 = scmp.eq.s32.totalorder %s35, 0
      %p268 = por %p266, %p267
      %p269 = scmp.ne.s32.totalorder %s261, %s263
      %p270 = scmp.eq.s32.totalorder %s40, 1
      %p271 = por %p269, %p270
      %p272 = scmp.ne.s32.totalorder %s263, %s264
      %p273 = scmp.eq.s32.totalorder %s40, 0
      %p274 = por %p272, %p273
      %p275 = scmp.ne.s32.totalorder %s263, %s264
      %p276 = scmp.eq.s32.totalorder %s41, 1
      %p277 = por %p275, %p276
      %p279 = scmp.ne.s32.totalorder %s264, %s278
      %p280 = scmp.eq.s32.totalorder %s41, 0
      %p281 = por %p279, %p280
      %s283 = sadd.s32 %s282, 1
      %p286 = scmp.eq.s32.totalorder %s35, 1
      %p287 = scmp.ne.s32.totalorder %s282, %s284
      %p288 = scmp.eq.s32.totalorder %s35, 0
      %p289 = por %p287, %p288
      %p290 = scmp.ne.s32.totalorder %s282, %s284
      %p291 = scmp.eq.s32.totalorder %s40, 1
      %p292 = por %p290, %p291
      %p293 = scmp.ne.s32.totalorder %s284, %s285
      %p294 = scmp.eq.s32.totalorder %s40, 0
      %p295 = por %p293, %p294
      %p296 = scmp.ne.s32.totalorder %s284, %s285
      %p297 = scmp.eq.s32.totalorder %s41, 1
      %p298 = por %p296, %p297
      %p300 = scmp.ne.s32.totalorder %s285, %s299
      %p301 = scmp.eq.s32.totalorder %s41, 0
      %p302 = por %p300, %p301
      %s304 = sadd.s32 %s303, 1
      %p307 = scmp.eq.s32.totalorder %s35, 1
      %p308 = scmp.ne.s32.totalorder %s303, %s305
      %p309 = scmp.eq.s32.totalorder %s35, 0
      %p310 = por %p308, %p309
      %p311 = scmp.ne.s32.totalorder %s303, %s305
      %p312 = scmp.eq.s32.totalorder %s40, 1
      %p313 = por %p311, %p312
      %p314 = scmp.ne.s32.totalorder %s305, %s306
      %p315 = scmp.eq.s32.totalorder %s40, 0
      %p316 = por %p314, %p315
      %p317 = scmp.ne.s32.totalorder %s305, %s306
      %p318 = scmp.eq.s32.totalorder %s41, 1
      %p319 = por %p317, %p318
      %p321 = scmp.ne.s32.totalorder %s306, %s320
      %p322 = scmp.eq.s32.totalorder %s41, 0
      %p323 = por %p321, %p322
      %s324 = ssub.s32 %s42, %s54
      %s325 = ssub.s32 %s43, %s50
      %s326 = sor.u32 %s324, %s325
      %p327 = scmp.eq.s32.totalorder %s326, 0
      %s329 = sadd.s32 %s328, 1
      %s330 = scalar_select %p327, %s328, %s329
      %p333 = pneg %p327
      %p334 = scmp.eq.s32.totalorder %s35, 1
      %p335 = por %p333, %p334
      %p336 = scmp.ne.s32.totalorder %s328, %s331
      %p337 = scmp.eq.s32.totalorder %s35, 0
      %p338 = por %p336, %p337
      %p339 = scmp.ne.s32.totalorder %s328, %s331
      %p340 = scmp.eq.s32.totalorder %s40, 1
      %p341 = por %p339, %p340
      %p342 = scmp.ne.s32.totalorder %s331, %s332
      %p343 = scmp.eq.s32.totalorder %s40, 0
      %p344 = por %p342, %p343
      %p345 = scmp.ne.s32.totalorder %s331, %s332
      %p346 = scmp.eq.s32.totalorder %s41, 1
      %p347 = por %p345, %p346
      %p349 = scmp.ne.s32.totalorder %s332, %s348
      %p350 = scmp.eq.s32.totalorder %s41, 0
      %p351 = por %p349, %p350
      %s352 = ssub.s32 %s42, %s54
      %s353 = ssub.s32 %s43, %s50
      %s354 = sor.u32 %s352, %s353
      %p355 = scmp.eq.s32.totalorder %s354, 0
      %s357 = sadd.s32 %s356, 1
      %s358 = scalar_select %p355, %s356, %s357
      %p361 = pneg %p355
      %p362 = scmp.eq.s32.totalorder %s35, 1
      %p363 = por %p361, %p362
      %p364 = scmp.ne.s32.totalorder %s356, %s359
      %p365 = scmp.eq.s32.totalorder %s35, 0
      %p366 = por %p364, %p365
      %p367 = scmp.ne.s32.totalorder %s356, %s359
      %p368 = scmp.eq.s32.totalorder %s40, 1
      %p369 = por %p367, %p368
      %p370 = scmp.ne.s32.totalorder %s359, %s360
      %p371 = scmp.eq.s32.totalorder %s40, 0
      %p372 = por %p370, %p371
      %p373 = scmp.ne.s32.totalorder %s359, %s360
      %p374 = scmp.eq.s32.totalorder %s41, 1
      %p375 = por %p373, %p374
      %p377 = scmp.ne.s32.totalorder %s360, %s376
      %p378 = scmp.eq.s32.totalorder %s41, 0
      %p379 = por %p377, %p378
      %p380 = scmp.le.s32.totalorder 1, %s35
      %p381 = scmp.lt.s32.totalorder %s35, 3
      %p382 = pnand %p380, %p381
      %p383 = pneg %p382
      // Predicated region
      $region9: #{tpu_custom_call.1} parent=5 // pred_check
        _
      $region10: #{tpu_custom_call.1} parent=5 // pred_check_branch
        %385 = sbr.rel (%p382) target = $region12
      $region11: #{tpu_custom_call.1} parent=5 // pred_region
        %s386 = ssub.s32 %s35, 1
        // Predicated region
        $region13: #{tpu_custom_call.1} parent=11 // pred_check
          %p387 = pneg %p148
        $region14: #{tpu_custom_call.1} parent=11 // pred_check_branch
          %389 = sbr.rel (%p387) target = $region16
        $region15: #{tpu_custom_call.1} parent=11 // pred_region
          %s391 = ssub.s32 1024, 1024
          %392 = vsyncadd [#allocation9], %s391
          %s393 = sshll.u32 [#allocation8], 4
          %s394 = int_to_ptr.vmem [resolvable:$true] %s393
          %399 = dma.hbm_to_vmem [thread:$0]  %s3, 1024, %s394, [#allocation9], 64, 64, 4
        $region16: #{tpu_custom_call.1} parent=11 // pred_fallthru
          _
        // Predicated region
        $region17: #{tpu_custom_call.1} parent=11 // pred_check
          %p400 = pneg %p169
        $region18: #{tpu_custom_call.1} parent=11 // pred_check_branch
          %402 = sbr.rel (%p400) target = $region20
        $region19: #{tpu_custom_call.1} parent=11 // pred_region
          %s404 = ssub.s32 1024, 1024
          %405 = vsyncadd [#allocation9], %s404
          %s406 = sshll.u32 [#allocation10], 4
          %s407 = int_to_ptr.vmem [resolvable:$true] %s406
          %412 = dma.hbm_to_vmem [thread:$0]  %s4, 1024, %s407, [#allocation9], 64, 64, 4
        $region20: #{tpu_custom_call.1} parent=11 // pred_fallthru
          _
        // Predicated region
        $region21: #{tpu_custom_call.1} parent=11 // pred_check
          %p413 = pneg %p190
        $region22: #{tpu_custom_call.1} parent=11 // pred_check_branch
          %415 = sbr.rel (%p413) target = $region24
        $region23: #{tpu_custom_call.1} parent=11 // pred_region
          %s417 = ssub.s32 1024, 1024
          %418 = vsyncadd [#allocation12], %s417
          %s419 = sshll.u32 [#allocation11], 4
          %s420 = int_to_ptr.vmem [resolvable:$true] %s419
          %425 = dma.hbm_to_vmem [thread:$0]  %s5, 1024, %s420, [#allocation12], 64, 64, 4
        $region24: #{tpu_custom_call.1} parent=11 // pred_fallthru
          _
        // Predicated region
        $region25: #{tpu_custom_call.1} parent=11 // pred_check
          %p426 = pneg %p211
        $region26: #{tpu_custom_call.1} parent=11 // pred_check_branch
          %428 = sbr.rel (%p426) target = $region28
        $region27: #{tpu_custom_call.1} parent=11 // pred_region
          %s430 = ssub.s32 1024, 1024
          %431 = vsyncadd [#allocation12], %s430
          %s432 = sshll.u32 [#allocation13], 4
          %s433 = int_to_ptr.vmem [resolvable:$true] %s432
          %438 = dma.hbm_to_vmem [thread:$0]  %s6, 1024, %s433, [#allocation12], 64, 64, 4
        $region28: #{tpu_custom_call.1} parent=11 // pred_fallthru
          _
        // Predicated region
        $region29: #{tpu_custom_call.1} parent=11 // pred_check
          %p439 = pneg %p232
        $region30: #{tpu_custom_call.1} parent=11 // pred_check_branch
          %441 = sbr.rel (%p439) target = $region32
        $region31: #{tpu_custom_call.1} parent=11 // pred_region
          %s443 = ssub.s32 2048, 2048
          %444 = vsyncadd [#allocation15], %s443
          %s445 = sshll.u32 [#allocation14], 4
          %s446 = int_to_ptr.vmem [resolvable:$true] %s445
          %451 = dma.hbm_to_vmem [thread:$0]  %s7, 2048, %s446, [#allocation15], 128, 128, 8
        $region32: #{tpu_custom_call.1} parent=11 // pred_fallthru
          _
        // Predicated region
        $region33: #{tpu_custom_call.1} parent=11 // pred_check
          %p452 = pneg %p253
        $region34: #{tpu_custom_call.1} parent=11 // pred_check_branch
          %454 = sbr.rel (%p452) target = $region36
        $region35: #{tpu_custom_call.1} parent=11 // pred_region
          %s456 = ssub.s32 2048, 2048
          %457 = vsyncadd [#allocation15], %s456
          %s458 = sshll.u32 [#allocation16], 4
          %s459 = int_to_ptr.vmem [resolvable:$true] %s458
          %464 = dma.hbm_to_vmem [thread:$0]  %s8, 2048, %s459, [#allocation15], 64, 64, 4
        $region36: #{tpu_custom_call.1} parent=11 // pred_fallthru
          _
        // Predicated region
        $region37: #{tpu_custom_call.1} parent=11 // pred_check
          %p465 = pneg %p274
        $region38: #{tpu_custom_call.1} parent=11 // pred_check_branch
          %467 = sbr.rel (%p465) target = $region40
        $region39: #{tpu_custom_call.1} parent=11 // pred_region
          _
        $region40: #{tpu_custom_call.1} parent=11 // pred_fallthru
          _
        // Predicated region
        $region41: #{tpu_custom_call.1} parent=11 // pred_check
          %p468 = pneg %p295
        $region42: #{tpu_custom_call.1} parent=11 // pred_check_branch
          %470 = sbr.rel (%p468) target = $region44
        $region43: #{tpu_custom_call.1} parent=11 // pred_region
          _
        $region44: #{tpu_custom_call.1} parent=11 // pred_fallthru
          _
        // Predicated region
        $region45: #{tpu_custom_call.1} parent=11 // pred_check
          %p471 = pneg %p316
        $region46: #{tpu_custom_call.1} parent=11 // pred_check_branch
          %473 = sbr.rel (%p471) target = $region48
        $region47: #{tpu_custom_call.1} parent=11 // pred_region
          _
        $region48: #{tpu_custom_call.1} parent=11 // pred_fallthru
          _
      $region12: #{tpu_custom_call.1} parent=5 // pred_fallthru
        _
      %p474 = scmp.lt.s32.totalorder %s35, 2
      // Predicated region
      $region49: #{tpu_custom_call.1} parent=5 // pred_check
        %p475 = pneg %p474
      $region50: #{tpu_custom_call.1} parent=5 // pred_check_branch
        %477 = sbr.rel (%p475) target = $region52
      $region51: #{tpu_custom_call.1} parent=5 // pred_region
        // Predicated region
        $region53: #{tpu_custom_call.1} parent=51 // pred_check
          %p478 = pneg %p69
        $region54: #{tpu_custom_call.1} parent=51 // pred_check_branch
          %480 = sbr.rel (%p478) target = $region56
        $region55: #{tpu_custom_call.1} parent=51 // pred_region
          %s481 = sand.u32 %s59, 1
          %s482 = scalar_lea.sflag [#allocation3], %s481
          %s483 = sand.u32 %s59, 1
          %s484 = smul.addr %s483, 16
          %s485 = scalar_lea.vmem [#allocation2], %s484
          %s486 = smul.u32 2, %s43
          %s488 = ssub.s32 256, 256
          %489 = vsyncadd %s482, %s488
          %s490 = smul.addr %s42, 2
          %s491 = sadd.s32 %s486, %s490
          %s492 = smul.addr %s491, 128
          %s493 = scalar_lea.hbm %s0, %s492
          %s494 = sshll.u32 %s485, 4
          %s495 = int_to_ptr.vmem [resolvable:$true] %s494
          %500 = dma.hbm_to_vmem [thread:$0]  %s493, 256, %s495, %s482, 128, 128, 8
        $region56: #{tpu_custom_call.1} parent=51 // pred_fallthru
          _
        // Predicated region
        $region57: #{tpu_custom_call.1} parent=51 // pred_check
          %p501 = pneg %p95
        $region58: #{tpu_custom_call.1} parent=51 // pred_check_branch
          %503 = sbr.rel (%p501) target = $region60
        $region59: #{tpu_custom_call.1} parent=51 // pred_region
          %s504 = sand.u32 %s35, 1
          %s505 = scalar_lea.sflag [#allocation6], %s504
          %s506 = sand.u32 %s85, 1
          %s507 = smul.addr %s506, 8
          %s508 = scalar_lea.vmem [#allocation5], %s507
          %s510 = ssub.s32 128, 128
          %511 = vsyncadd %s505, %s510
          %s512 = smul.addr %s42, 2
          %s513 = smul.addr %s512, 64
          %s514 = scalar_lea.hbm %s1, %s513
          %s515 = sshll.u32 %s508, 4
          %s516 = int_to_ptr.vmem [resolvable:$true] %s515
          %521 = dma.hbm_to_vmem [thread:$0]  %s514, 128, %s516, %s505, 64, 64, 4
        $region60: #{tpu_custom_call.1} parent=51 // pred_fallthru
          _
        // Predicated region
        $region61: #{tpu_custom_call.1} parent=51 // pred_check
          %p522 = pneg %p121
        $region62: #{tpu_custom_call.1} parent=51 // pred_check_branch
          %524 = sbr.rel (%p522) target = $region64
        $region63: #{tpu_custom_call.1} parent=51 // pred_region
          %s525 = sand.u32 %s35, 1
          %s526 = scalar_lea.sflag [#allocation6], %s525
          %s527 = sand.u32 %s111, 1
          %s528 = smul.addr %s527, 8
          %s529 = scalar_lea.vmem [#allocation7], %s528
          %s531 = ssub.s32 128, 128
          %532 = vsyncadd %s526, %s531
          %s533 = smul.addr %s42, 2
          %s534 = smul.addr %s533, 64
          %s535 = scalar_lea.hbm %s2, %s534
          %s536 = sshll.u32 %s529, 4
          %s537 = int_to_ptr.vmem [resolvable:$true] %s536
          %542 = dma.hbm_to_vmem [thread:$0]  %s535, 128, %s537, %s526, 64, 64, 4
        $region64: #{tpu_custom_call.1} parent=51 // pred_fallthru
          _
      $region52: #{tpu_custom_call.1} parent=5 // pred_fallthru
        _
      %p543 = scmp.le.s32.totalorder 1, %s35
      %p544 = scmp.lt.s32.totalorder %s35, 3
      %p545 = pnand %p543, %p544
      %p546 = pneg %p545
      // Predicated region
      $region65: #{tpu_custom_call.1} parent=5 // pred_check
        _
      $region66: #{tpu_custom_call.1} parent=5 // pred_check_branch
        %548 = sbr.rel (%p545) target = $region68
      $region67: #{tpu_custom_call.1} parent=5 // pred_region
        %s549 = ssub.s32 %s35, 1
        %s550 = sand.u32 %s62, 1
        %s551 = scalar_lea.sflag [#allocation3], %s550
        %s552 = sand.u32 %s62, 1
        %s553 = smul.addr %s552, 16
        %s554 = scalar_lea.vmem [#allocation2], %s553
        // Predicated region
        $region69: #{tpu_custom_call.1} parent=67 // pred_check
          %p555 = pneg %p75
        $region70: #{tpu_custom_call.1} parent=67 // pred_check_branch
          %557 = sbr.rel (%p555) target = $region72
        $region71: #{tpu_custom_call.1} parent=67 // pred_region
          %558 = dma.done %s551, 256
        $region72: #{tpu_custom_call.1} parent=67 // pred_fallthru
          _
        %s559 = sand.u32 %s40, 1
        %s560 = scalar_lea.sflag [#allocation6], %s559
        %s561 = sand.u32 %s88, 1
        %s562 = smul.addr %s561, 8
        %s563 = scalar_lea.vmem [#allocation5], %s562
        // Predicated region
        $region73: #{tpu_custom_call.1} parent=67 // pred_check
          %p564 = pneg %p101
        $region74: #{tpu_custom_call.1} parent=67 // pred_check_branch
          %566 = sbr.rel (%p564) target = $region76
        $region75: #{tpu_custom_call.1} parent=67 // pred_region
          %567 = dma.done %s560, 128
        $region76: #{tpu_custom_call.1} parent=67 // pred_fallthru
          _
        %s568 = sand.u32 %s40, 1
        %s569 = scalar_lea.sflag [#allocation6], %s568
        %s570 = sand.u32 %s114, 1
        %s571 = smul.addr %s570, 8
        %s572 = scalar_lea.vmem [#allocation7], %s571
        // Predicated region
        $region77: #{tpu_custom_call.1} parent=67 // pred_check
          %p573 = pneg %p127
        $region78: #{tpu_custom_call.1} parent=67 // pred_check_branch
          %575 = sbr.rel (%p573) target = $region80
        $region79: #{tpu_custom_call.1} parent=67 // pred_region
          %576 = dma.done %s569, 128
        $region80: #{tpu_custom_call.1} parent=67 // pred_fallthru
          _
        // Predicated region
        $region81: #{tpu_custom_call.1} parent=67 // pred_check
          %p577 = pneg %p148
        $region82: #{tpu_custom_call.1} parent=67 // pred_check_branch
          %579 = sbr.rel (%p577) target = $region84
        $region83: #{tpu_custom_call.1} parent=67 // pred_region
          %580 = dma.done [#allocation9], 1024
        $region84: #{tpu_custom_call.1} parent=67 // pred_fallthru
          _
        // Predicated region
        $region85: #{tpu_custom_call.1} parent=67 // pred_check
          %p581 = pneg %p169
        $region86: #{tpu_custom_call.1} parent=67 // pred_check_branch
          %583 = sbr.rel (%p581) target = $region88
        $region87: #{tpu_custom_call.1} parent=67 // pred_region
          %584 = dma.done [#allocation9], 1024
        $region88: #{tpu_custom_call.1} parent=67 // pred_fallthru
          _
        // Predicated region
        $region89: #{tpu_custom_call.1} parent=67 // pred_check
          %p585 = pneg %p190
        $region90: #{tpu_custom_call.1} parent=67 // pred_check_branch
          %587 = sbr.rel (%p585) target = $region92
        $region91: #{tpu_custom_call.1} parent=67 // pred_region
          %588 = dma.done [#allocation12], 1024
        $region92: #{tpu_custom_call.1} parent=67 // pred_fallthru
          _
        // Predicated region
        $region93: #{tpu_custom_call.1} parent=67 // pred_check
          %p589 = pneg %p211
        $region94: #{tpu_custom_call.1} parent=67 // pred_check_branch
          %591 = sbr.rel (%p589) target = $region96
        $region95: #{tpu_custom_call.1} parent=67 // pred_region
          %592 = dma.done [#allocation12], 1024
        $region96: #{tpu_custom_call.1} parent=67 // pred_fallthru
          _
        // Predicated region
        $region97: #{tpu_custom_call.1} parent=67 // pred_check
          %p593 = pneg %p232
        $region98: #{tpu_custom_call.1} parent=67 // pred_check_branch
          %595 = sbr.rel (%p593) target = $region100
        $region99: #{tpu_custom_call.1} parent=67 // pred_region
          %596 = dma.done [#allocation15], 2048
        $region100: #{tpu_custom_call.1} parent=67 // pred_fallthru
          _
        // Predicated region
        $region101: #{tpu_custom_call.1} parent=67 // pred_check
          %p597 = pneg %p253
        $region102: #{tpu_custom_call.1} parent=67 // pred_check_branch
          %599 = sbr.rel (%p597) target = $region104
        $region103: #{tpu_custom_call.1} parent=67 // pred_region
          %600 = dma.done [#allocation15], 2048
        $region104: #{tpu_custom_call.1} parent=67 // pred_fallthru
          _
        %s601 = sand.u32 %s62, 1
        %s602 = scalar_lea.sflag [#allocation3], %s601
        %s603 = sand.u32 %s62, 1
        %s604 = smul.addr %s603, 16
        %s605 = scalar_lea.vmem [#allocation2], %s604
        %p606 = pneg %p75
        %p607 = pneg %p72
        %s608 = sand.u32 %s40, 1
        %s609 = scalar_lea.sflag [#allocation6], %s608
        %s610 = sand.u32 %s88, 1
        %s611 = smul.addr %s610, 8
        %s612 = scalar_lea.vmem [#allocation5], %s611
        %p613 = pneg %p101
        %p614 = pneg %p98
        %s615 = sand.u32 %s40, 1
        %s616 = scalar_lea.sflag [#allocation6], %s615
        %s617 = sand.u32 %s114, 1
        %s618 = smul.addr %s617, 8
        %s619 = scalar_lea.vmem [#allocation7], %s618
        %p620 = pneg %p127
        %p621 = pneg %p124
        %p622 = pneg %p148
        %p623 = pneg %p145
        %p624 = pneg %p169
        %p625 = pneg %p166
        %p626 = pneg %p190
        %p627 = pneg %p187
        %p628 = pneg %p211
        %p629 = pneg %p208
        %p630 = pneg %p232
        %p631 = pneg %p229
        %p632 = pneg %p253
        %p633 = pneg %p250
        %p634 = pneg %p274
        %p635 = pneg %p271
        %p636 = pneg %p295
        %p637 = pneg %p292
        %p638 = pneg %p316
        %p639 = pneg %p313
        %p640 = pneg %p344
        %p641 = pneg %p341
        %s642 = sand.u32 %s331, 1
        %s643 = scalar_lea.sflag [#allocation4], %s642
        %s644 = sand.u32 %s331, 1
        %s645 = smul.addr %s644, 16
        %s646 = scalar_lea.vmem [#allocation17], %s645
        %p647 = pneg %p372
        %p648 = pneg %p369
        %s649 = sand.u32 %s359, 1
        %s650 = scalar_lea.sflag [#allocation19], %s649
        %s651 = sand.u32 %s359, 1
        %s652 = smul.addr %s651, 32
        %s653 = scalar_lea.vmem [#allocation18], %s652
        %s654 = smul.u32 2, %s45
        %s655 = smul.u32 2, %s45
        %s656 = smul.u32 2, %s45
        %v658 = vld [vmem:[%s554] sm:$0xff]
        %v659 = vld [vmem:[%s554 + $0x8] sm:$0xff]
        %v660 = vld [vmem:[%s563] sm:$0xf]
        %v661 = vld [vmem:[%s563 + $0x4] sm:$0xf]
        %v662 = vld [vmem:[%s572] sm:$0xf]
        %v663 = vld [vmem:[%s572 + $0x4] sm:$0xf]
        %v664 = vld [vmem:[%s10] sm:$0x1]
        %v665 = vld [vmem:[%s10 + $0x1] sm:$0x1]
        %v666 = vld [vmem:[%s10 + $0x2] sm:$0x1]
        %v667 = vld [vmem:[%s10 + $0x3] sm:$0x1]
        %v668 = vld [vmem:[%s10 + $0x4] sm:$0x1]
        %v669 = vpack.c.bf16 %v659, %v658
        %v670 = vld [vmem:[#allocation8] sm:$0xf]
        %v671 = vld [vmem:[#allocation8 + $0x4] sm:$0xf]
        %v672 = vld [vmem:[#allocation8 + $0x8] sm:$0xf]
        %v673 = vld [vmem:[#allocation8 + $0xc] sm:$0xf]
        %v674 = vld [vmem:[#allocation8 + $0x10] sm:$0xf]
        %v675 = vld [vmem:[#allocation8 + $0x14] sm:$0xf]
        %v676 = vld [vmem:[#allocation8 + $0x18] sm:$0xf]
        %v677 = vld [vmem:[#allocation8 + $0x1c] sm:$0xf]
        %v678 = vld [vmem:[#allocation8 + $0x20] sm:$0xf]
        %v679 = vld [vmem:[#allocation8 + $0x24] sm:$0xf]
        %v680 = vld [vmem:[#allocation8 + $0x28] sm:$0xf]
        %v681 = vld [vmem:[#allocation8 + $0x2c] sm:$0xf]
        %v682 = vld [vmem:[#allocation8 + $0x30] sm:$0xf]
        %v683 = vld [vmem:[#allocation8 + $0x34] sm:$0xf]
        %v684 = vld [vmem:[#allocation8 + $0x38] sm:$0xf]
        %v685 = vld [vmem:[#allocation8 + $0x3c] sm:$0xf]
        %v686 = vlaneseq
        %v687 = vshrl.u32 %v686, 7
        %v688 = vsub.s32 0, %v687
        %v689 = vrot.slane %v664, %v688
        %v706 = vunpack.c.l.b16 %v670
        %v707 = vunpack.c.l.b16 %v671
        %v708 = vunpack.c.l.b16 %v672
        %v709 = vunpack.c.l.b16 %v673
        %v710 = vunpack.c.l.b16 %v674
        %v711 = vunpack.c.l.b16 %v675
        %v712 = vunpack.c.l.b16 %v676
        %v713 = vunpack.c.l.b16 %v677
        %v714 = vunpack.c.l.b16 %v678
        %v715 = vunpack.c.l.b16 %v679
        %v716 = vunpack.c.l.b16 %v680
        %v717 = vunpack.c.l.b16 %v681
        %v718 = vunpack.c.l.b16 %v682
        %v719 = vunpack.c.l.b16 %v683
        %v720 = vunpack.c.l.b16 %v684
        %v721 = vunpack.c.l.b16 %v685
        %v722 = vpack.c.b16 %v707, %v706
        %v723 = vpack.c.b16 %v709, %v708
        %v724 = vpack.c.b16 %v711, %v710
        %v725 = vpack.c.b16 %v713, %v712
        %v726 = vpack.c.b16 %v715, %v714
        %v727 = vpack.c.b16 %v717, %v716
        %v728 = vpack.c.b16 %v719, %v718
        %v729 = vpack.c.b16 %v721, %v720
        %738 = vmatprep.subr.bf16.mxu0 0
        %739 = vmatpush1.bf16.msra.mxu0 %v722
        %740 = vmatprep.subr.bf16.mxu0 0
        %741 = vmatpush1.bf16.msra.mxu0 %v723
        %742 = vmatprep.subr.bf16.mxu0 0
        %743 = vmatpush1.bf16.msra.mxu0 %v724
        %744 = vmatprep.subr.bf16.mxu0 0
        %745 = vmatpush1.bf16.msra.mxu0 %v725
        %746 = vmatprep.subr.bf16.mxu0 0
        %747 = vmatpush1.bf16.msra.mxu0 %v726
        %748 = vmatprep.subr.bf16.mxu0 0
        %749 = vmatpush1.bf16.msra.mxu0 %v727
        %750 = vmatprep.subr.bf16.mxu0 0
        %751 = vmatpush1.bf16.msra.mxu0 %v728
        %752 = vmatprep.subr.bf16.mxu0 0
        %753 = vmatpush1.bf16.msra.mxu0 %v729
        %754 = vmatprep.subr.bf16.mxu0 0
        %755 = vmatpush1.bf16.msra.mxu0 0
        %756 = vmatprep.subr.bf16.mxu0 0
        %757 = vmatpush1.bf16.msra.mxu0 0
        %758 = vmatprep.subr.bf16.mxu0 0
        %759 = vmatpush1.bf16.msra.mxu0 0
        %760 = vmatprep.subr.bf16.mxu0 0
        %761 = vmatpush1.bf16.msra.mxu0 0
        %762 = vmatprep.subr.bf16.mxu0 0
        %763 = vmatpush1.bf16.msra.mxu0 0
        %764 = vmatprep.subr.bf16.mxu0 0
        %765 = vmatpush1.bf16.msra.mxu0 0
        %766 = vmatprep.subr.bf16.mxu0 0
        %767 = vmatpush1.bf16.msra.mxu0 0
        %768 = vmatprep.subr.bf16.mxu0 0
        %769 = vmatpush1.bf16.msra.mxu0 0
        %770 = vmatprep.mubr.bf16.mxu0 0
        %771 = vmatmul.mubr.bf16.gmra.mrb[0].mxu0 %v669
        %v772 = vpop.f32.mrb[0].mxu0
        %v773 = vadd.f32 %v689, %v772
        %v774 = vpop.f32.mrb[0].mxu0
        %v775 = vpop.f32.mrb[0].mxu0
        %v776 = vadd.f32 %v689, %v775
        %v777 = vpop.f32.mrb[0].mxu0
        %778 = vdwg.mxu0
        %v779 = vld [vmem:[#allocation10] sm:$0xf]
        %v780 = vld [vmem:[#allocation10 + $0x4] sm:$0xf]
        %v781 = vld [vmem:[#allocation10 + $0x8] sm:$0xf]
        %v782 = vld [vmem:[#allocation10 + $0xc] sm:$0xf]
        %v783 = vld [vmem:[#allocation10 + $0x10] sm:$0xf]
        %v784 = vld [vmem:[#allocation10 + $0x14] sm:$0xf]
        %v785 = vld [vmem:[#allocation10 + $0x18] sm:$0xf]
        %v786 = vld [vmem:[#allocation10 + $0x1c] sm:$0xf]
        %v787 = vld [vmem:[#allocation10 + $0x20] sm:$0xf]
        %v788 = vld [vmem:[#allocation10 + $0x24] sm:$0xf]
        %v789 = vld [vmem:[#allocation10 + $0x28] sm:$0xf]
        %v790 = vld [vmem:[#allocation10 + $0x2c] sm:$0xf]
        %v791 = vld [vmem:[#allocation10 + $0x30] sm:$0xf]
        %v792 = vld [vmem:[#allocation10 + $0x34] sm:$0xf]
        %v793 = vld [vmem:[#allocation10 + $0x38] sm:$0xf]
        %v794 = vld [vmem:[#allocation10 + $0x3c] sm:$0xf]
        %v795 = vlaneseq
        %v796 = vshrl.u32 %v795, 7
        %v797 = vsub.s32 0, %v796
        %v798 = vrot.slane %v665, %v797
        %v801 = vunpack.c.l.b16 %v660
        %v802 = vunpack.c.l.b16 %v661
        %v803 = vpack.c.b16 %v802, %v801
        %v821 = vunpack.c.l.b16 %v779
        %v822 = vunpack.c.l.b16 %v780
        %v823 = vunpack.c.l.b16 %v781
        %v824 = vunpack.c.l.b16 %v782
        %v825 = vunpack.c.l.b16 %v783
        %v826 = vunpack.c.l.b16 %v784
        %v827 = vunpack.c.l.b16 %v785
        %v828 = vunpack.c.l.b16 %v786
        %v829 = vunpack.c.l.b16 %v787
        %v830 = vunpack.c.l.b16 %v788
        %v831 = vunpack.c.l.b16 %v789
        %v832 = vunpack.c.l.b16 %v790
        %v833 = vunpack.c.l.b16 %v791
        %v834 = vunpack.c.l.b16 %v792
        %v835 = vunpack.c.l.b16 %v793
        %v836 = vunpack.c.l.b16 %v794
        %v837 = vpack.c.b16 %v822, %v821
        %v838 = vpack.c.b16 %v824, %v823
        %v839 = vpack.c.b16 %v826, %v825
        %v840 = vpack.c.b16 %v828, %v827
        %v841 = vpack.c.b16 %v830, %v829
        %v842 = vpack.c.b16 %v832, %v831
        %v843 = vpack.c.b16 %v834, %v833
        %v844 = vpack.c.b16 %v836, %v835
        %853 = vmatprep.subr.bf16.mxu0 0
        %854 = vmatpush1.bf16.msra.mxu0 %v837
        %855 = vmatprep.subr.bf16.mxu0 0
        %856 = vmatpush1.bf16.msra.mxu0 %v838
        %857 = vmatprep.subr.bf16.mxu0 0
        %858 = vmatpush1.bf16.msra.mxu0 %v839
        %859 = vmatprep.subr.bf16.mxu0 0
        %860 = vmatpush1.bf16.msra.mxu0 %v840
        %861 = vmatprep.subr.bf16.mxu0 0
        %862 = vmatpush1.bf16.msra.mxu0 %v841
        %863 = vmatprep.subr.bf16.mxu0 0
        %864 = vmatpush1.bf16.msra.mxu0 %v842
        %865 = vmatprep.subr.bf16.mxu0 0
        %866 = vmatpush1.bf16.msra.mxu0 %v843
        %867 = vmatprep.subr.bf16.mxu0 0
        %868 = vmatpush1.bf16.msra.mxu0 %v844
        %869 = vmatprep.subr.bf16.mxu0 0
        %870 = vmatpush1.bf16.msra.mxu0 0
        %871 = vmatprep.subr.bf16.mxu0 0
        %872 = vmatpush1.bf16.msra.mxu0 0
        %873 = vmatprep.subr.bf16.mxu0 0
        %874 = vmatpush1.bf16.msra.mxu0 0
        %875 = vmatprep.subr.bf16.mxu0 0
        %876 = vmatpush1.bf16.msra.mxu0 0
        %877 = vmatprep.subr.bf16.mxu0 0
        %878 = vmatpush1.bf16.msra.mxu0 0
        %879 = vmatprep.subr.bf16.mxu0 0
        %880 = vmatpush1.bf16.msra.mxu0 0
        %881 = vmatprep.subr.bf16.mxu0 0
        %882 = vmatpush1.bf16.msra.mxu0 0
        %883 = vmatprep.subr.bf16.mxu0 0
        %884 = vmatpush1.bf16.msra.mxu0 0
        %885 = vmatprep.mubr.bf16.mxu0 0
        %886 = vmatmul.mubr.bf16.gmra.mrb[0].mxu0 %v803
        %v887 = vpop.f32.mrb[0].mxu0
        %v888 = vadd.f32 %v798, %v887
        %v889 = vpop.f32.mrb[0].mxu0
        %v890 = vpop.f32.mrb[0].mxu0
        %v891 = vadd.f32 %v798, %v890
        %v892 = vpop.f32.mrb[0].mxu0
        %893 = vdwg.mxu0
        %v894 = vld [vmem:[#allocation11] sm:$0xf]
        %v895 = vld [vmem:[#allocation11 + $0x4] sm:$0xf]
        %v896 = vld [vmem:[#allocation11 + $0x8] sm:$0xf]
        %v897 = vld [vmem:[#allocation11 + $0xc] sm:$0xf]
        %v898 = vld [vmem:[#allocation11 + $0x10] sm:$0xf]
        %v899 = vld [vmem:[#allocation11 + $0x14] sm:$0xf]
        %v900 = vld [vmem:[#allocation11 + $0x18] sm:$0xf]
        %v901 = vld [vmem:[#allocation11 + $0x1c] sm:$0xf]
        %v902 = vld [vmem:[#allocation11 + $0x20] sm:$0xf]
        %v903 = vld [vmem:[#allocation11 + $0x24] sm:$0xf]
        %v904 = vld [vmem:[#allocation11 + $0x28] sm:$0xf]
        %v905 = vld [vmem:[#allocation11 + $0x2c] sm:$0xf]
        %v906 = vld [vmem:[#allocation11 + $0x30] sm:$0xf]
        %v907 = vld [vmem:[#allocation11 + $0x34] sm:$0xf]
        %v908 = vld [vmem:[#allocation11 + $0x38] sm:$0xf]
        %v909 = vld [vmem:[#allocation11 + $0x3c] sm:$0xf]
        %v910 = vlaneseq
        %v911 = vshrl.u32 %v910, 7
        %v912 = vsub.s32 0, %v911
        %v913 = vrot.slane %v666, %v912
        %v916 = vunpack.c.l.b16 %v662
        %v917 = vunpack.c.l.b16 %v663
        %v918 = vpack.c.b16 %v917, %v916
        %v936 = vunpack.c.l.b16 %v894
        %v937 = vunpack.c.l.b16 %v895
        %v938 = vunpack.c.l.b16 %v896
        %v939 = vunpack.c.l.b16 %v897
        %v940 = vunpack.c.l.b16 %v898
        %v941 = vunpack.c.l.b16 %v899
        %v942 = vunpack.c.l.b16 %v900
        %v943 = vunpack.c.l.b16 %v901
        %v944 = vunpack.c.l.b16 %v902
        %v945 = vunpack.c.l.b16 %v903
        %v946 = vunpack.c.l.b16 %v904
        %v947 = vunpack.c.l.b16 %v905
        %v948 = vunpack.c.l.b16 %v906
        %v949 = vunpack.c.l.b16 %v907
        %v950 = vunpack.c.l.b16 %v908
        %v951 = vunpack.c.l.b16 %v909
        %v952 = vpack.c.b16 %v937, %v936
        %v953 = vpack.c.b16 %v939, %v938
        %v954 = vpack.c.b16 %v941, %v940
        %v955 = vpack.c.b16 %v943, %v942
        %v956 = vpack.c.b16 %v945, %v944
        %v957 = vpack.c.b16 %v947, %v946
        %v958 = vpack.c.b16 %v949, %v948
        %v959 = vpack.c.b16 %v951, %v950
        %968 = vmatprep.subr.bf16.mxu0 0
        %969 = vmatpush1.bf16.msra.mxu0 %v952
        %970 = vmatprep.subr.bf16.mxu0 0
        %971 = vmatpush1.bf16.msra.mxu0 %v953
        %972 = vmatprep.subr.bf16.mxu0 0
        %973 = vmatpush1.bf16.msra.mxu0 %v954
        %974 = vmatprep.subr.bf16.mxu0 0
        %975 = vmatpush1.bf16.msra.mxu0 %v955
        %976 = vmatprep.subr.bf16.mxu0 0
        %977 = vmatpush1.bf16.msra.mxu0 %v956
        %978 = vmatprep.subr.bf16.mxu0 0
        %979 = vmatpush1.bf16.msra.mxu0 %v957
        %980 = vmatprep.subr.bf16.mxu0 0
        %981 = vmatpush1.bf16.msra.mxu0 %v958
        %982 = vmatprep.subr.bf16.mxu0 0
        %983 = vmatpush1.bf16.msra.mxu0 %v959
        %984 = vmatprep.subr.bf16.mxu0 0
        %985 = vmatpush1.bf16.msra.mxu0 0
        %986 = vmatprep.subr.bf16.mxu0 0
        %987 = vmatpush1.bf16.msra.mxu0 0
        %988 = vmatprep.subr.bf16.mxu0 0
        %989 = vmatpush1.bf16.msra.mxu0 0
        %990 = vmatprep.subr.bf16.mxu0 0
        %991 = vmatpush1.bf16.msra.mxu0 0
        %992 = vmatprep.subr.bf16.mxu0 0
        %993 = vmatpush1.bf16.msra.mxu0 0
        %994 = vmatprep.subr.bf16.mxu0 0
        %995 = vmatpush1.bf16.msra.mxu0 0
        %996 = vmatprep.subr.bf16.mxu0 0
        %997 = vmatpush1.bf16.msra.mxu0 0
        %998 = vmatprep.subr.bf16.mxu0 0
        %999 = vmatpush1.bf16.msra.mxu0 0
        %1000 = vmatprep.mubr.bf16.mxu0 0
        %1001 = vmatmul.mubr.bf16.gmra.mrb[0].mxu0 %v918
        %v1002 = vpop.f32.mrb[0].mxu0
        %v1003 = vadd.f32 %v913, %v1002
        %v1004 = vpop.f32.mrb[0].mxu0
        %v1005 = vpop.f32.mrb[0].mxu0
        %v1006 = vadd.f32 %v913, %v1005
        %v1007 = vpop.f32.mrb[0].mxu0
        %1008 = vdwg.mxu0
        %v1009 = vpack.c.bf16 %v776, %v773
        %v1010 = vpack.c.bf16 %v891, %v888
        %v1011 = vpack.c.bf16 %v1006, %v1003
        %vm1012 = vcmask 261120
        %v1014 = vsel %vm1012, %v1009, 0
        %v1017 = vsel %vm1012, %v1010, 0
        %1019 = vmatprep.subr.bf16.mxu0 0
        %1020 = vmatpush1.bf16.xpose.msra.mxu0 %v1017
        %1021 = vmatprep.subr.bf16.mxu0 0
        %1022 = vmatpush1.bf16.xpose.msra.mxu0 0
        %1023 = vmatprep.subr.bf16.mxu0 0
        %1024 = vmatpush1.bf16.xpose.msra.mxu0 0
        %1025 = vmatprep.subr.bf16.mxu0 0
        %1026 = vmatpush1.bf16.xpose.msra.mxu0 0
        %1027 = vmatprep.subr.bf16.mxu0 0
        %1028 = vmatpush1.bf16.xpose.msra.mxu0 0
        %1029 = vmatprep.subr.bf16.mxu0 0
        %1030 = vmatpush1.bf16.xpose.msra.mxu0 0
        %1031 = vmatprep.subr.bf16.mxu0 0
        %1032 = vmatpush1.bf16.xpose.msra.mxu0 0
        %1033 = vmatprep.subr.bf16.mxu0 0
        %1034 = vmatpush1.bf16.xpose.msra.mxu0 0
        %1035 = vmatprep.subr.bf16.mxu0 0
        %1036 = vmatpush1.bf16.xpose.msra.mxu0 0
        %1037 = vmatprep.subr.bf16.mxu0 0
        %1038 = vmatpush1.bf16.xpose.msra.mxu0 0
        %1039 = vmatprep.subr.bf16.mxu0 0
        %1040 = vmatpush1.bf16.xpose.msra.mxu0 0
        %1041 = vmatprep.subr.bf16.mxu0 0
        %1042 = vmatpush1.bf16.xpose.msra.mxu0 0
        %1043 = vmatprep.subr.bf16.mxu0 0
        %1044 = vmatpush1.bf16.xpose.msra.mxu0 0
        %1045 = vmatprep.subr.bf16.mxu0 0
        %1046 = vmatpush1.bf16.xpose.msra.mxu0 0
        %1047 = vmatprep.subr.bf16.mxu0 0
        %1048 = vmatpush1.bf16.xpose.msra.mxu0 0
        %1049 = vmatprep.subr.bf16.mxu0 0
        %1050 = vmatpush1.bf16.xpose.msra.mxu0 0
        %1051 = vmatprep.mubr.bf16.mxu0 0
        %1052 = vmatmul.mubr.bf16.gmra.mrb[0].mxu0 %v1014
        %v1053 = vpop.f32.mrb[0].mxu0
        %v1054 = vadd.f32 0.0, %v1053
        %v1055 = vpop.f32.mrb[0].mxu0
        %v1056 = vpop.f32.mrb[0].mxu0
        %v1057 = vadd.f32 0.0, %v1056
        %v1058 = vpop.f32.mrb[0].mxu0
        %1059 = vdwg.mxu0
        %vm1060 = vcmask 130048
        %v1061 = vsel %vm1060, %v1054, -inf
        %1062 = vmax.xlane.f32.xlu0 %v1061
        %v1063 = vpop.xlane.xlu0 %1062
        %v1064 = vsel %vm1060, %v1057, -inf
        %1065 = vmax.xlane.f32.xlu0 %v1064
        %v1066 = vpop.xlane.xlu0 %1065
        %v1067 = vsub.f32 %v1054, %v1063
        %v1068 = vsub.f32 %v1057, %v1066
        %v1069 = vmul.f32 %v1067, 1.442695
        %v1070 = vpow.pop %v1069
        %v1071 = vmul.f32 %v1068, 1.442695
        %v1072 = vpow.pop %v1071
        %v1073 = vsel %vm1060, %v1070, 0.0
        %1074 = vadd.xlane.f32.xlu0 %v1073
        %v1075 = vpop.xlane.xlu0 %1074
        %v1076 = vsel %vm1060, %v1072, 0.0
        %1077 = vadd.xlane.f32.xlu0 %v1076
        %v1078 = vpop.xlane.xlu0 %1077
        %v1079 = vrcp.pop %v1075
        %v1080 = vrcp.pop %v1078
        %v1081 = vmul.f32 %v1070, %v1079
        %v1082 = vmul.f32 %v1072, %v1080
        %v1083 = vpack.c.bf16 %v1082, %v1081
        %v1085 = vunpack.c.l.b16 %v1083
        %v1086 = vunpack.c.h.b16 %v1083
        %v1087 = vpack.c.b16 %v1085, %v1085
        %v1088 = vpack.c.b16 %v1086, %v1086
        %vm1091 = vcmask 125952
        %1092 = vst.msk [vmem:[%s653] sm:$0xf] %vm1091, %v1087
        %1093 = vst.msk [vmem:[%s653 + $0x4] sm:$0xf] %vm1091, %v1088
        %v1095 = vsel %vm1060, %v1083, 0
        %1097 = vmatprep.subr.bf16.mxu0 0
        %1098 = vmatpush1.bf16.msra.mxu0 %v1011
        %1099 = vmatprep.subr.bf16.mxu0 0
        %1100 = vmatpush1.bf16.msra.mxu0 0
        %1101 = vmatprep.subr.bf16.mxu0 0
        %1102 = vmatpush1.bf16.msra.mxu0 0
        %1103 = vmatprep.subr.bf16.mxu0 0
        %1104 = vmatpush1.bf16.msra.mxu0 0
        %1105 = vmatprep.subr.bf16.mxu0 0
        %1106 = vmatpush1.bf16.msra.mxu0 0
        %1107 = vmatprep.subr.bf16.mxu0 0
        %1108 = vmatpush1.bf16.msra.mxu0 0
        %1109 = vmatprep.subr.bf16.mxu0 0
        %1110 = vmatpush1.bf16.msra.mxu0 0
        %1111 = vmatprep.subr.bf16.mxu0 0
        %1112 = vmatpush1.bf16.msra.mxu0 0
        %1113 = vmatprep.subr.bf16.mxu0 0
        %1114 = vmatpush1.bf16.msra.mxu0 0
        %1115 = vmatprep.subr.bf16.mxu0 0
        %1116 = vmatpush1.bf16.msra.mxu0 0
        %1117 = vmatprep.subr.bf16.mxu0 0
        %1118 = vmatpush1.bf16.msra.mxu0 0
        %1119 = vmatprep.subr.bf16.mxu0 0
        %1120 = vmatpush1.bf16.msra.mxu0 0
        %1121 = vmatprep.subr.bf16.mxu0 0
        %1122 = vmatpush1.bf16.msra.mxu0 0
        %1123 = vmatprep.subr.bf16.mxu0 0
        %1124 = vmatpush1.bf16.msra.mxu0 0
        %1125 = vmatprep.subr.bf16.mxu0 0
        %1126 = vmatpush1.bf16.msra.mxu0 0
        %1127 = vmatprep.subr.bf16.mxu0 0
        %1128 = vmatpush1.bf16.msra.mxu0 0
        %1129 = vmatprep.mubr.bf16.mxu0 0
        %1130 = vmatmul.mubr.bf16.gmra.mrb[0].mxu0 %v1095
        %v1131 = vpop.f32.mrb[0].mxu0
        %v1132 = vadd.f32 0.0, %v1131
        %v1133 = vpop.f32.mrb[0].mxu0
        %v1134 = vpop.f32.mrb[0].mxu0
        %v1135 = vadd.f32 0.0, %v1134
        %v1136 = vpop.f32.mrb[0].mxu0
        %1137 = vdwg.mxu0
        %1139 = vrot.lane.b32.xlu0 %v1009, 96
        %v1140 = vpop.permute.xlu0 %1139
        %1142 = vrot.lane.b32.xlu0 %v1010, 96
        %v1143 = vpop.permute.xlu0 %1142
        %v1145 = vsel %vm1012, %v1140, 0
        %v1148 = vsel %vm1012, %v1143, 0
        %1150 = vmatprep.subr.bf16.mxu0 0
        %1151 = vmatpush1.bf16.xpose.msra.mxu0 %v1148
        %1152 = vmatprep.subr.bf16.mxu0 0
        %1153 = vmatpush1.bf16.xpose.msra.mxu0 0
        %1154 = vmatprep.subr.bf16.mxu0 0
        %1155 = vmatpush1.bf16.xpose.msra.mxu0 0
        %1156 = vmatprep.subr.bf16.mxu0 0
        %1157 = vmatpush1.bf16.xpose.msra.mxu0 0
        %1158 = vmatprep.subr.bf16.mxu0 0
        %1159 = vmatpush1.bf16.xpose.msra.mxu0 0
        %1160 = vmatprep.subr.bf16.mxu0 0
        %1161 = vmatpush1.bf16.xpose.msra.mxu0 0
        %1162 = vmatprep.subr.bf16.mxu0 0
        %1163 = vmatpush1.bf16.xpose.msra.mxu0 0
        %1164 = vmatprep.subr.bf16.mxu0 0
        %1165 = vmatpush1.bf16.xpose.msra.mxu0 0
        %1166 = vmatprep.subr.bf16.mxu0 0
        %1167 = vmatpush1.bf16.xpose.msra.mxu0 0
        %1168 = vmatprep.subr.bf16.mxu0 0
        %1169 = vmatpush1.bf16.xpose.msra.mxu0 0
        %1170 = vmatprep.subr.bf16.mxu0 0
        %1171 = vmatpush1.bf16.xpose.msra.mxu0 0
        %1172 = vmatprep.subr.bf16.mxu0 0
        %1173 = vmatpush1.bf16.xpose.msra.mxu0 0
        %1174 = vmatprep.subr.bf16.mxu0 0
        %1175 = vmatpush1.bf16.xpose.msra.mxu0 0
        %1176 = vmatprep.subr.bf16.mxu0 0
        %1177 = vmatpush1.bf16.xpose.msra.mxu0 0
        %1178 = vmatprep.subr.bf16.mxu0 0
        %1179 = vmatpush1.bf16.xpose.msra.mxu0 0
        %1180 = vmatprep.subr.bf16.mxu0 0
        %1181 = vmatpush1.bf16.xpose.msra.mxu0 0
        %1182 = vmatprep.mubr.bf16.mxu0 0
        %1183 = vmatmul.mubr.bf16.gmra.mrb[0].mxu0 %v1145
        %v1184 = vpop.f32.mrb[0].mxu0
        %v1185 = vadd.f32 0.0, %v1184
        %v1186 = vpop.f32.mrb[0].mxu0
        %v1187 = vpop.f32.mrb[0].mxu0
        %v1188 = vadd.f32 0.0, %v1187
        %v1189 = vpop.f32.mrb[0].mxu0
        %1190 = vdwg.mxu0
        %v1191 = vsel %vm1060, %v1185, -inf
        %1192 = vmax.xlane.f32.xlu0 %v1191
        %v1193 = vpop.xlane.xlu0 %1192
        %v1194 = vsel %vm1060, %v1188, -inf
        %1195 = vmax.xlane.f32.xlu0 %v1194
        %v1196 = vpop.xlane.xlu0 %1195
        %v1197 = vsub.f32 %v1185, %v1193
        %v1198 = vsub.f32 %v1188, %v1196
        %v1199 = vmul.f32 %v1197, 1.442695
        %v1200 = vpow.pop %v1199
        %v1201 = vmul.f32 %v1198, 1.442695
        %v1202 = vpow.pop %v1201
        %v1203 = vsel %vm1060, %v1200, 0.0
        %1204 = vadd.xlane.f32.xlu0 %v1203
        %v1205 = vpop.xlane.xlu0 %1204
        %v1206 = vsel %vm1060, %v1202, 0.0
        %1207 = vadd.xlane.f32.xlu0 %v1206
        %v1208 = vpop.xlane.xlu0 %1207
        %v1209 = vrcp.pop %v1205
        %v1210 = vrcp.pop %v1208
        %v1211 = vmul.f32 %v1200, %v1209
        %v1212 = vmul.f32 %v1202, %v1210
        %v1213 = vpack.c.bf16 %v1212, %v1211
        %v1215 = vunpack.c.l.b16 %v1213
        %v1216 = vunpack.c.h.b16 %v1213
        %v1217 = vpack.c.b16 %v1215, %v1215
        %v1218 = vpack.c.b16 %v1216, %v1216
        %s1221 = scalar_lea.vmem %s653, 8 [#allocation18]
        %1222 = vst.msk [vmem:[%s1221] sm:$0xf] %vm1091, %v1217
        %1223 = vst.msk [vmem:[%s1221 + $0x4] sm:$0xf] %vm1091, %v1218
        %1225 = vrot.lane.b32.xlu0 %v1011, 96
        %v1226 = vpop.permute.xlu0 %1225
        %v1229 = vsel %vm1060, %v1213, 0
        %1231 = vmatprep.subr.bf16.mxu0 0
        %1232 = vmatpush1.bf16.msra.mxu0 %v1226
        %1233 = vmatprep.subr.bf16.mxu0 0
        %1234 = vmatpush1.bf16.msra.mxu0 0
        %1235 = vmatprep.subr.bf16.mxu0 0
        %1236 = vmatpush1.bf16.msra.mxu0 0
        %1237 = vmatprep.subr.bf16.mxu0 0
        %1238 = vmatpush1.bf16.msra.mxu0 0
        %1239 = vmatprep.subr.bf16.mxu0 0
        %1240 = vmatpush1.bf16.msra.mxu0 0
        %1241 = vmatprep.subr.bf16.mxu0 0
        %1242 = vmatpush1.bf16.msra.mxu0 0
        %1243 = vmatprep.subr.bf16.mxu0 0
        %1244 = vmatpush1.bf16.msra.mxu0 0
        %1245 = vmatprep.subr.bf16.mxu0 0
        %1246 = vmatpush1.bf16.msra.mxu0 0
        %1247 = vmatprep.subr.bf16.mxu0 0
        %1248 = vmatpush1.bf16.msra.mxu0 0
        %1249 = vmatprep.subr.bf16.mxu0 0
        %1250 = vmatpush1.bf16.msra.mxu0 0
        %1251 = vmatprep.subr.bf16.mxu0 0
        %1252 = vmatpush1.bf16.msra.mxu0 0
        %1253 = vmatprep.subr.bf16.mxu0 0
        %1254 = vmatpush1.bf16.msra.mxu0 0
        %1255 = vmatprep.subr.bf16.mxu0 0
        %1256 = vmatpush1.bf16.msra.mxu0 0
        %1257 = vmatprep.subr.bf16.mxu0 0
        %1258 = vmatpush1.bf16.msra.mxu0 0
        %1259 = vmatprep.subr.bf16.mxu0 0
        %1260 = vmatpush1.bf16.msra.mxu0 0
        %1261 = vmatprep.subr.bf16.mxu0 0
        %1262 = vmatpush1.bf16.msra.mxu0 0
        %1263 = vmatprep.mubr.bf16.mxu0 0
        %1264 = vmatmul.mubr.bf16.gmra.mrb[0].mxu0 %v1229
        %v1265 = vpop.f32.mrb[0].mxu0
        %v1266 = vadd.f32 0.0, %v1265
        %v1267 = vpop.f32.mrb[0].mxu0
        %v1268 = vpop.f32.mrb[0].mxu0
        %v1269 = vadd.f32 0.0, %v1268
        %v1270 = vpop.f32.mrb[0].mxu0
        %1271 = vdwg.mxu0
        %1272 = vrot.lane.b32.xlu0 %v1009, 64
        %v1273 = vpop.permute.xlu0 %1272
        %1274 = vrot.lane.b32.xlu0 %v1010, 64
        %v1275 = vpop.permute.xlu0 %1274
        %v1277 = vsel %vm1012, %v1273, 0
        %v1280 = vsel %vm1012, %v1275, 0
        %1282 = vmatprep.subr.bf16.mxu0 0
        %1283 = vmatpush1.bf16.xpose.msra.mxu0 %v1280
        %1284 = vmatprep.subr.bf16.mxu0 0
        %1285 = vmatpush1.bf16.xpose.msra.mxu0 0
        %1286 = vmatprep.subr.bf16.mxu0 0
        %1287 = vmatpush1.bf16.xpose.msra.mxu0 0
        %1288 = vmatprep.subr.bf16.mxu0 0
        %1289 = vmatpush1.bf16.xpose.msra.mxu0 0
        %1290 = vmatprep.subr.bf16.mxu0 0
        %1291 = vmatpush1.bf16.xpose.msra.mxu0 0
        %1292 = vmatprep.subr.bf16.mxu0 0
        %1293 = vmatpush1.bf16.xpose.msra.mxu0 0
        %1294 = vmatprep.subr.bf16.mxu0 0
        %1295 = vmatpush1.bf16.xpose.msra.mxu0 0
        %1296 = vmatprep.subr.bf16.mxu0 0
        %1297 = vmatpush1.bf16.xpose.msra.mxu0 0
        %1298 = vmatprep.subr.bf16.mxu0 0
        %1299 = vmatpush1.bf16.xpose.msra.mxu0 0
        %1300 = vmatprep.subr.bf16.mxu0 0
        %1301 = vmatpush1.bf16.xpose.msra.mxu0 0
        %1302 = vmatprep.subr.bf16.mxu0 0
        %1303 = vmatpush1.bf16.xpose.msra.mxu0 0
        %1304 = vmatprep.subr.bf16.mxu0 0
        %1305 = vmatpush1.bf16.xpose.msra.mxu0 0
        %1306 = vmatprep.subr.bf16.mxu0 0
        %1307 = vmatpush1.bf16.xpose.msra.mxu0 0
        %1308 = vmatprep.subr.bf16.mxu0 0
        %1309 = vmatpush1.bf16.xpose.msra.mxu0 0
        %1310 = vmatprep.subr.bf16.mxu0 0
        %1311 = vmatpush1.bf16.xpose.msra.mxu0 0
        %1312 = vmatprep.subr.bf16.mxu0 0
        %1313 = vmatpush1.bf16.xpose.msra.mxu0 0
        %1314 = vmatprep.mubr.bf16.mxu0 0
        %1315 = vmatmul.mubr.bf16.gmra.mrb[0].mxu0 %v1277
        %v1316 = vpop.f32.mrb[0].mxu0
        %v1317 = vadd.f32 0.0, %v1316
        %v1318 = vpop.f32.mrb[0].mxu0
        %v1319 = vpop.f32.mrb[0].mxu0
        %v1320 = vadd.f32 0.0, %v1319
        %v1321 = vpop.f32.mrb[0].mxu0
        %1322 = vdwg.mxu0
        %v1323 = vsel %vm1060, %v1317, -inf
        %1324 = vmax.xlane.f32.xlu0 %v1323
        %v1325 = vpop.xlane.xlu0 %1324
        %v1326 = vsel %vm1060, %v1320, -inf
        %1327 = vmax.xlane.f32.xlu0 %v1326
        %v1328 = vpop.xlane.xlu0 %1327
        %v1329 = vsub.f32 %v1317, %v1325
        %v1330 = vsub.f32 %v1320, %v1328
        %v1331 = vmul.f32 %v1329, 1.442695
        %v1332 = vpow.pop %v1331
        %v1333 = vmul.f32 %v1330, 1.442695
        %v1334 = vpow.pop %v1333
        %v1335 = vsel %vm1060, %v1332, 0.0
        %1336 = vadd.xlane.f32.xlu0 %v1335
        %v1337 = vpop.xlane.xlu0 %1336
        %v1338 = vsel %vm1060, %v1334, 0.0
        %1339 = vadd.xlane.f32.xlu0 %v1338
        %v1340 = vpop.xlane.xlu0 %1339
        %v1341 = vrcp.pop %v1337
        %v1342 = vrcp.pop %v1340
        %v1343 = vmul.f32 %v1332, %v1341
        %v1344 = vmul.f32 %v1334, %v1342
        %v1345 = vpack.c.bf16 %v1344, %v1343
        %v1347 = vunpack.c.l.b16 %v1345
        %v1348 = vunpack.c.h.b16 %v1345
        %v1349 = vpack.c.b16 %v1347, %v1347
        %v1350 = vpack.c.b16 %v1348, %v1348
        %s1353 = scalar_lea.vmem %s653, 16 [#allocation18]
        %1354 = vst.msk [vmem:[%s1353] sm:$0xf] %vm1091, %v1349
        %1355 = vst.msk [vmem:[%s1353 + $0x4] sm:$0xf] %vm1091, %v1350
        %1356 = vrot.lane.b32.xlu0 %v1011, 64
        %v1357 = vpop.permute.xlu0 %1356
        %v1360 = vsel %vm1060, %v1345, 0
        %1362 = vmatprep.subr.bf16.mxu0 0
        %1363 = vmatpush1.bf16.msra.mxu0 %v1357
        %1364 = vmatprep.subr.bf16.mxu0 0
        %1365 = vmatpush1.bf16.msra.mxu0 0
        %1366 = vmatprep.subr.bf16.mxu0 0
        %1367 = vmatpush1.bf16.msra.mxu0 0
        %1368 = vmatprep.subr.bf16.mxu0 0
        %1369 = vmatpush1.bf16.msra.mxu0 0
        %1370 = vmatprep.subr.bf16.mxu0 0
        %1371 = vmatpush1.bf16.msra.mxu0 0
        %1372 = vmatprep.subr.bf16.mxu0 0
        %1373 = vmatpush1.bf16.msra.mxu0 0
        %1374 = vmatprep.subr.bf16.mxu0 0
        %1375 = vmatpush1.bf16.msra.mxu0 0
        %1376 = vmatprep.subr.bf16.mxu0 0
        %1377 = vmatpush1.bf16.msra.mxu0 0
        %1378 = vmatprep.subr.bf16.mxu0 0
        %1379 = vmatpush1.bf16.msra.mxu0 0
        %1380 = vmatprep.subr.bf16.mxu0 0
        %1381 = vmatpush1.bf16.msra.mxu0 0
        %1382 = vmatprep.subr.bf16.mxu0 0
        %1383 = vmatpush1.bf16.msra.mxu0 0
        %1384 = vmatprep.subr.bf16.mxu0 0
        %1385 = vmatpush1.bf16.msra.mxu0 0
        %1386 = vmatprep.subr.bf16.mxu0 0
        %1387 = vmatpush1.bf16.msra.mxu0 0
        %1388 = vmatprep.subr.bf16.mxu0 0
        %1389 = vmatpush1.bf16.msra.mxu0 0
        %1390 = vmatprep.subr.bf16.mxu0 0
        %1391 = vmatpush1.bf16.msra.mxu0 0
        %1392 = vmatprep.subr.bf16.mxu0 0
        %1393 = vmatpush1.bf16.msra.mxu0 0
        %1394 = vmatprep.mubr.bf16.mxu0 0
        %1395 = vmatmul.mubr.bf16.gmra.mrb[0].mxu0 %v1360
        %v1396 = vpop.f32.mrb[0].mxu0
        %v1397 = vadd.f32 0.0, %v1396
        %v1398 = vpop.f32.mrb[0].mxu0
        %v1399 = vpop.f32.mrb[0].mxu0
        %v1400 = vadd.f32 0.0, %v1399
        %v1401 = vpop.f32.mrb[0].mxu0
        %1402 = vdwg.mxu0
        %1403 = vrot.lane.b32.xlu0 %v1009, 32
        %v1404 = vpop.permute.xlu0 %1403
        %1405 = vrot.lane.b32.xlu0 %v1010, 32
        %v1406 = vpop.permute.xlu0 %1405
        %v1408 = vsel %vm1012, %v1404, 0
        %v1411 = vsel %vm1012, %v1406, 0
        %1413 = vmatprep.subr.bf16.mxu0 0
        %1414 = vmatpush1.bf16.xpose.msra.mxu0 %v1411
        %1415 = vmatprep.subr.bf16.mxu0 0
        %1416 = vmatpush1.bf16.xpose.msra.mxu0 0
        %1417 = vmatprep.subr.bf16.mxu0 0
        %1418 = vmatpush1.bf16.xpose.msra.mxu0 0
        %1419 = vmatprep.subr.bf16.mxu0 0
        %1420 = vmatpush1.bf16.xpose.msra.mxu0 0
        %1421 = vmatprep.subr.bf16.mxu0 0
        %1422 = vmatpush1.bf16.xpose.msra.mxu0 0
        %1423 = vmatprep.subr.bf16.mxu0 0
        %1424 = vmatpush1.bf16.xpose.msra.mxu0 0
        %1425 = vmatprep.subr.bf16.mxu0 0
        %1426 = vmatpush1.bf16.xpose.msra.mxu0 0
        %1427 = vmatprep.subr.bf16.mxu0 0
        %1428 = vmatpush1.bf16.xpose.msra.mxu0 0
        %1429 = vmatprep.subr.bf16.mxu0 0
        %1430 = vmatpush1.bf16.xpose.msra.mxu0 0
        %1431 = vmatprep.subr.bf16.mxu0 0
        %1432 = vmatpush1.bf16.xpose.msra.mxu0 0
        %1433 = vmatprep.subr.bf16.mxu0 0
        %1434 = vmatpush1.bf16.xpose.msra.mxu0 0
        %1435 = vmatprep.subr.bf16.mxu0 0
        %1436 = vmatpush1.bf16.xpose.msra.mxu0 0
        %1437 = vmatprep.subr.bf16.mxu0 0
        %1438 = vmatpush1.bf16.xpose.msra.mxu0 0
        %1439 = vmatprep.subr.bf16.mxu0 0
        %1440 = vmatpush1.bf16.xpose.msra.mxu0 0
        %1441 = vmatprep.subr.bf16.mxu0 0
        %1442 = vmatpush1.bf16.xpose.msra.mxu0 0
        %1443 = vmatprep.subr.bf16.mxu0 0
        %1444 = vmatpush1.bf16.xpose.msra.mxu0 0
        %1445 = vmatprep.mubr.bf16.mxu0 0
        %1446 = vmatmul.mubr.bf16.gmra.mrb[0].mxu0 %v1408
        %v1447 = vpop.f32.mrb[0].mxu0
        %v1448 = vadd.f32 0.0, %v1447
        %v1449 = vpop.f32.mrb[0].mxu0
        %v1450 = vpop.f32.mrb[0].mxu0
        %v1451 = vadd.f32 0.0, %v1450
        %v1452 = vpop.f32.mrb[0].mxu0
        %1453 = vdwg.mxu0
        %v1454 = vsel %vm1060, %v1448, -inf
        %1455 = vmax.xlane.f32.xlu0 %v1454
        %v1456 = vpop.xlane.xlu0 %1455
        %v1457 = vsel %vm1060, %v1451, -inf
        %1458 = vmax.xlane.f32.xlu0 %v1457
        %v1459 = vpop.xlane.xlu0 %1458
        %v1460 = vsub.f32 %v1448, %v1456
        %v1461 = vsub.f32 %v1451, %v1459
        %v1462 = vmul.f32 %v1460, 1.442695
        %v1463 = vpow.pop %v1462
        %v1464 = vmul.f32 %v1461, 1.442695
        %v1465 = vpow.pop %v1464
        %v1466 = vsel %vm1060, %v1463, 0.0
        %1467 = vadd.xlane.f32.xlu0 %v1466
        %v1468 = vpop.xlane.xlu0 %1467
        %v1469 = vsel %vm1060, %v1465, 0.0
        %1470 = vadd.xlane.f32.xlu0 %v1469
        %v1471 = vpop.xlane.xlu0 %1470
        %v1472 = vrcp.pop %v1468
        %v1473 = vrcp.pop %v1471
        %v1474 = vmul.f32 %v1463, %v1472
        %v1475 = vmul.f32 %v1465, %v1473
        %v1476 = vpack.c.bf16 %v1475, %v1474
        %v1478 = vunpack.c.l.b16 %v1476
        %v1479 = vunpack.c.h.b16 %v1476
        %v1480 = vpack.c.b16 %v1478, %v1478
        %v1481 = vpack.c.b16 %v1479, %v1479
        %s1484 = scalar_lea.vmem %s653, 24 [#allocation18]
        %1485 = vst.msk [vmem:[%s1484] sm:$0xf] %vm1091, %v1480
        %1486 = vst.msk [vmem:[%s1484 + $0x4] sm:$0xf] %vm1091, %v1481
        %1487 = vrot.lane.b32.xlu0 %v1011, 32
        %v1488 = vpop.permute.xlu0 %1487
        %v1491 = vsel %vm1060, %v1476, 0
        %1493 = vmatprep.subr.bf16.mxu0 0
        %1494 = vmatpush1.bf16.msra.mxu0 %v1488
        %1495 = vmatprep.subr.bf16.mxu0 0
        %1496 = vmatpush1.bf16.msra.mxu0 0
        %1497 = vmatprep.subr.bf16.mxu0 0
        %1498 = vmatpush1.bf16.msra.mxu0 0
        %1499 = vmatprep.subr.bf16.mxu0 0
        %1500 = vmatpush1.bf16.msra.mxu0 0
        %1501 = vmatprep.subr.bf16.mxu0 0
        %1502 = vmatpush1.bf16.msra.mxu0 0
        %1503 = vmatprep.subr.bf16.mxu0 0
        %1504 = vmatpush1.bf16.msra.mxu0 0
        %1505 = vmatprep.subr.bf16.mxu0 0
        %1506 = vmatpush1.bf16.msra.mxu0 0
        %1507 = vmatprep.subr.bf16.mxu0 0
        %1508 = vmatpush1.bf16.msra.mxu0 0
        %1509 = vmatprep.subr.bf16.mxu0 0
        %1510 = vmatpush1.bf16.msra.mxu0 0
        %1511 = vmatprep.subr.bf16.mxu0 0
        %1512 = vmatpush1.bf16.msra.mxu0 0
        %1513 = vmatprep.subr.bf16.mxu0 0
        %1514 = vmatpush1.bf16.msra.mxu0 0
        %1515 = vmatprep.subr.bf16.mxu0 0
        %1516 = vmatpush1.bf16.msra.mxu0 0
        %1517 = vmatprep.subr.bf16.mxu0 0
        %1518 = vmatpush1.bf16.msra.mxu0 0
        %1519 = vmatprep.subr.bf16.mxu0 0
        %1520 = vmatpush1.bf16.msra.mxu0 0
        %1521 = vmatprep.subr.bf16.mxu0 0
        %1522 = vmatpush1.bf16.msra.mxu0 0
        %1523 = vmatprep.subr.bf16.mxu0 0
        %1524 = vmatpush1.bf16.msra.mxu0 0
        %1525 = vmatprep.mubr.bf16.mxu0 0
        %1526 = vmatmul.mubr.bf16.gmra.mrb[0].mxu0 %v1491
        %v1527 = vpop.f32.mrb[0].mxu0
        %v1528 = vadd.f32 0.0, %v1527
        %v1529 = vpop.f32.mrb[0].mxu0
        %v1530 = vpop.f32.mrb[0].mxu0
        %v1531 = vadd.f32 0.0, %v1530
        %v1532 = vpop.f32.mrb[0].mxu0
        %1533 = vdwg.mxu0
        %1536 = vrot.lane.b32.xlu0 %v1266, 32
        %v1537 = vpop.permute.xlu0 %1536
        %1538 = vrot.lane.b32.xlu0 %v1269, 32
        %v1539 = vpop.permute.xlu0 %1538
        %1544 = vrot.lane.b32.xlu0 %v1397, 64
        %v1545 = vpop.permute.xlu0 %1544
        %1546 = vrot.lane.b32.xlu0 %v1400, 64
        %v1547 = vpop.permute.xlu0 %1546
        %1552 = vrot.lane.b32.xlu0 %v1528, 96
        %v1553 = vpop.permute.xlu0 %1552
        %1554 = vrot.lane.b32.xlu0 %v1531, 96
        %v1555 = vpop.permute.xlu0 %1554
        %v1558 = vsel %vm1012, %v1132, %v1537
        %v1559 = vsel %vm1012, %v1135, %v1539
        %vm1560 = vcmask 523264
        %v1561 = vsel %vm1560, %v1558, %v1545
        %v1562 = vsel %vm1560, %v1559, %v1547
        %vm1563 = vcmask 785408
        %v1564 = vsel %vm1563, %v1561, %v1553
        %v1565 = vsel %vm1563, %v1562, %v1555
        %v1566 = vpack.c.bf16 %v1565, %v1564
        %v1567 = vld [vmem:[#allocation13] sm:$0xf]
        %v1568 = vld [vmem:[#allocation13 + $0x4] sm:$0xf]
        %v1569 = vld [vmem:[#allocation13 + $0x8] sm:$0xf]
        %v1570 = vld [vmem:[#allocation13 + $0xc] sm:$0xf]
        %v1571 = vld [vmem:[#allocation13 + $0x10] sm:$0xf]
        %v1572 = vld [vmem:[#allocation13 + $0x14] sm:$0xf]
        %v1573 = vld [vmem:[#allocation13 + $0x18] sm:$0xf]
        %v1574 = vld [vmem:[#allocation13 + $0x1c] sm:$0xf]
        %v1575 = vld [vmem:[#allocation13 + $0x20] sm:$0xf]
        %v1576 = vld [vmem:[#allocation13 + $0x24] sm:$0xf]
        %v1577 = vld [vmem:[#allocation13 + $0x28] sm:$0xf]
        %v1578 = vld [vmem:[#allocation13 + $0x2c] sm:$0xf]
        %v1579 = vld [vmem:[#allocation13 + $0x30] sm:$0xf]
        %v1580 = vld [vmem:[#allocation13 + $0x34] sm:$0xf]
        %v1581 = vld [vmem:[#allocation13 + $0x38] sm:$0xf]
        %v1582 = vld [vmem:[#allocation13 + $0x3c] sm:$0xf]
        %v1583 = vlaneseq
        %v1584 = vshrl.u32 %v1583, 7
        %v1585 = vsub.s32 0, %v1584
        %v1586 = vrot.slane %v667, %v1585
        %v1603 = vunpack.c.l.b16 %v1567
        %v1604 = vunpack.c.l.b16 %v1568
        %v1605 = vunpack.c.l.b16 %v1569
        %v1606 = vunpack.c.l.b16 %v1570
        %v1607 = vunpack.c.l.b16 %v1571
        %v1608 = vunpack.c.l.b16 %v1572
        %v1609 = vunpack.c.l.b16 %v1573
        %v1610 = vunpack.c.l.b16 %v1574
        %v1611 = vunpack.c.l.b16 %v1575
        %v1612 = vunpack.c.l.b16 %v1576
        %v1613 = vunpack.c.l.b16 %v1577
        %v1614 = vunpack.c.l.b16 %v1578
        %v1615 = vunpack.c.l.b16 %v1579
        %v1616 = vunpack.c.l.b16 %v1580
        %v1617 = vunpack.c.l.b16 %v1581
        %v1618 = vunpack.c.l.b16 %v1582
        %v1619 = vpack.c.b16 %v1604, %v1603
        %v1620 = vpack.c.b16 %v1606, %v1605
        %v1621 = vpack.c.b16 %v1608, %v1607
        %v1622 = vpack.c.b16 %v1610, %v1609
        %v1623 = vpack.c.b16 %v1612, %v1611
        %v1624 = vpack.c.b16 %v1614, %v1613
        %v1625 = vpack.c.b16 %v1616, %v1615
        %v1626 = vpack.c.b16 %v1618, %v1617
        %1635 = vmatprep.subr.bf16.mxu0 0
        %1636 = vmatpush1.bf16.msra.mxu0 %v1619
        %1637 = vmatprep.subr.bf16.mxu0 0
        %1638 = vmatpush1.bf16.msra.mxu0 %v1620
        %1639 = vmatprep.subr.bf16.mxu0 0
        %1640 = vmatpush1.bf16.msra.mxu0 %v1621
        %1641 = vmatprep.subr.bf16.mxu0 0
        %1642 = vmatpush1.bf16.msra.mxu0 %v1622
        %1643 = vmatprep.subr.bf16.mxu0 0
        %1644 = vmatpush1.bf16.msra.mxu0 %v1623
        %1645 = vmatprep.subr.bf16.mxu0 0
        %1646 = vmatpush1.bf16.msra.mxu0 %v1624
        %1647 = vmatprep.subr.bf16.mxu0 0
        %1648 = vmatpush1.bf16.msra.mxu0 %v1625
        %1649 = vmatprep.subr.bf16.mxu0 0
        %1650 = vmatpush1.bf16.msra.mxu0 %v1626
        %1651 = vmatprep.subr.bf16.mxu0 0
        %1652 = vmatpush1.bf16.msra.mxu0 0
        %1653 = vmatprep.subr.bf16.mxu0 0
        %1654 = vmatpush1.bf16.msra.mxu0 0
        %1655 = vmatprep.subr.bf16.mxu0 0
        %1656 = vmatpush1.bf16.msra.mxu0 0
        %1657 = vmatprep.subr.bf16.mxu0 0
        %1658 = vmatpush1.bf16.msra.mxu0 0
        %1659 = vmatprep.subr.bf16.mxu0 0
        %1660 = vmatpush1.bf16.msra.mxu0 0
        %1661 = vmatprep.subr.bf16.mxu0 0
        %1662 = vmatpush1.bf16.msra.mxu0 0
        %1663 = vmatprep.subr.bf16.mxu0 0
        %1664 = vmatpush1.bf16.msra.mxu0 0
        %1665 = vmatprep.subr.bf16.mxu0 0
        %1666 = vmatpush1.bf16.msra.mxu0 0
        %1667 = vmatprep.mubr.bf16.mxu0 0
        %1668 = vmatmul.mubr.bf16.gmra.mrb[0].mxu0 %v1566
        %v1669 = vpop.f32.mrb[0].mxu0
        %v1670 = vadd.f32 %v1586, %v1669
        %v1671 = vpop.f32.mrb[0].mxu0
        %v1672 = vpop.f32.mrb[0].mxu0
        %v1673 = vadd.f32 %v1586, %v1672
        %v1674 = vpop.f32.mrb[0].mxu0
        %1675 = vdwg.mxu0
        %v1676 = vadd.f32 %v1670, %v658
        %v1677 = vadd.f32 %v1673, %v659
        %v1678 = vld [vmem:[%s11] sm:$0x1]
        %v1679 = vld [vmem:[%s11 + $0x1] sm:$0x1]
        %1680 = vadd.xlane.f32.xlu0 %v1676
        %v1681 = vpop.xlane.xlu0 %1680
        %1682 = vadd.xlane.f32.xlu0 %v1677
        %v1683 = vpop.xlane.xlu0 %1682
        %v1684 = vrcp.pop 128.0
        %v1685 = vmul.f32 %v1681, %v1684
        %v1686 = vmul.f32 %v1683, %v1684
        %v1687 = vsub.f32 %v1676, %v1685
        %v1688 = vsub.f32 %v1677, %v1686
        %v1689 = vmul.f32 %v1687, %v1687
        %v1690 = vmul.f32 %v1688, %v1688
        %1691 = vadd.xlane.f32.xlu0 %v1689
        %v1692 = vpop.xlane.xlu0 %1691
        %1693 = vadd.xlane.f32.xlu0 %v1690
        %v1694 = vpop.xlane.xlu0 %1693
        %v1695 = vmul.f32 %v1692, %v1684
        %v1696 = vmul.f32 %v1694, %v1684
        %v1697 = vadd.f32 %v1695, 1e-05
        %v1698 = vadd.f32 %v1696, 1e-05
        %v1699 = vrsqrt.pop %v1697
        %v1700 = vrsqrt.pop %v1698
        %v1701 = vmul.f32 %v1687, %v1699
        %v1702 = vmul.f32 %v1688, %v1700
        %v1703 = vlaneseq
        %v1704 = vshrl.u32 %v1703, 7
        %v1705 = vsub.s32 0, %v1704
        %v1706 = vrot.slane %v1678, %v1705
        %v1707 = vmul.f32 %v1701, %v1706
        %v1708 = vmul.f32 %v1702, %v1706
        %v1709 = vlaneseq
        %v1710 = vshrl.u32 %v1709, 7
        %v1711 = vsub.s32 0, %v1710
        %v1712 = vrot.slane %v1679, %v1711
        %v1713 = vadd.f32 %v1707, %v1712
        %v1714 = vadd.f32 %v1708, %v1712
        %v1715 = vpack.c.bf16 %v1714, %v1713
        %v1716 = vld [vmem:[#allocation14] sm:$0xff]
        %v1717 = vld [vmem:[#allocation14 + $0x8] sm:$0xff]
        %v1718 = vld [vmem:[#allocation14 + $0x10] sm:$0xff]
        %v1719 = vld [vmem:[#allocation14 + $0x18] sm:$0xff]
        %v1720 = vld [vmem:[#allocation14 + $0x20] sm:$0xff]
        %v1721 = vld [vmem:[#allocation14 + $0x28] sm:$0xff]
        %v1722 = vld [vmem:[#allocation14 + $0x30] sm:$0xff]
        %v1723 = vld [vmem:[#allocation14 + $0x38] sm:$0xff]
        %v1724 = vld [vmem:[#allocation14 + $0x40] sm:$0xff]
        %v1725 = vld [vmem:[#allocation14 + $0x48] sm:$0xff]
        %v1726 = vld [vmem:[#allocation14 + $0x50] sm:$0xff]
        %v1727 = vld [vmem:[#allocation14 + $0x58] sm:$0xff]
        %v1728 = vld [vmem:[#allocation14 + $0x60] sm:$0xff]
        %v1729 = vld [vmem:[#allocation14 + $0x68] sm:$0xff]
        %v1730 = vld [vmem:[#allocation14 + $0x70] sm:$0xff]
        %v1731 = vld [vmem:[#allocation14 + $0x78] sm:$0xff]
        %v1732 = vld [vmem:[%s9] sm:$0x3]
        %v1734 = vlaneseq
        %v1735 = vshrl.u32 %v1734, 7
        %v1736 = vsub.s32 0, %v1735
        %v1737 = vrot.slane %v1732, %v1736
        %v1738 = vlaneseq
        %v1739 = vshrl.u32 %v1738, 7
        %v1740 = vsub.s32 1, %v1739
        %v1741 = vrot.slane %v1732, %v1740
        %v1760 = vunpack.c.l.b16 %v1716
        %v1761 = vunpack.c.h.b16 %v1716
        %v1762 = vunpack.c.l.b16 %v1717
        %v1763 = vunpack.c.h.b16 %v1717
        %v1764 = vunpack.c.l.b16 %v1718
        %v1765 = vunpack.c.h.b16 %v1718
        %v1766 = vunpack.c.l.b16 %v1719
        %v1767 = vunpack.c.h.b16 %v1719
        %v1768 = vunpack.c.l.b16 %v1720
        %v1769 = vunpack.c.h.b16 %v1720
        %v1770 = vunpack.c.l.b16 %v1721
        %v1771 = vunpack.c.h.b16 %v1721
        %v1772 = vunpack.c.l.b16 %v1722
        %v1773 = vunpack.c.h.b16 %v1722
        %v1774 = vunpack.c.l.b16 %v1723
        %v1775 = vunpack.c.h.b16 %v1723
        %v1776 = vunpack.c.l.b16 %v1724
        %v1777 = vunpack.c.h.b16 %v1724
        %v1778 = vunpack.c.l.b16 %v1725
        %v1779 = vunpack.c.h.b16 %v1725
        %v1780 = vunpack.c.l.b16 %v1726
        %v1781 = vunpack.c.h.b16 %v1726
        %v1782 = vunpack.c.l.b16 %v1727
        %v1783 = vunpack.c.h.b16 %v1727
        %v1784 = vunpack.c.l.b16 %v1728
        %v1785 = vunpack.c.h.b16 %v1728
        %v1786 = vunpack.c.l.b16 %v1729
        %v1787 = vunpack.c.h.b16 %v1729
        %v1788 = vunpack.c.l.b16 %v1730
        %v1789 = vunpack.c.h.b16 %v1730
        %v1790 = vunpack.c.l.b16 %v1731
        %v1791 = vunpack.c.h.b16 %v1731
        %v1792 = vpack.c.b16 %v1762, %v1760
        %v1793 = vpack.c.b16 %v1763, %v1761
        %v1794 = vpack.c.b16 %v1766, %v1764
        %v1795 = vpack.c.b16 %v1767, %v1765
        %v1796 = vpack.c.b16 %v1770, %v1768
        %v1797 = vpack.c.b16 %v1771, %v1769
        %v1798 = vpack.c.b16 %v1774, %v1772
        %v1799 = vpack.c.b16 %v1775, %v1773
        %v1800 = vpack.c.b16 %v1778, %v1776
        %v1801 = vpack.c.b16 %v1779, %v1777
        %v1802 = vpack.c.b16 %v1782, %v1780
        %v1803 = vpack.c.b16 %v1783, %v1781
        %v1804 = vpack.c.b16 %v1786, %v1784
        %v1805 = vpack.c.b16 %v1787, %v1785
        %v1806 = vpack.c.b16 %v1790, %v1788
        %v1807 = vpack.c.b16 %v1791, %v1789
        %1824 = vmatprep.subr.bf16.mxu0 %v1793
        %1825 = vmatpush1.bf16.msra.mxu0 %v1792
        %1826 = vmatprep.subr.bf16.mxu0 %v1795
        %1827 = vmatpush1.bf16.msra.mxu0 %v1794
        %1828 = vmatprep.subr.bf16.mxu0 %v1797
        %1829 = vmatpush1.bf16.msra.mxu0 %v1796
        %1830 = vmatprep.subr.bf16.mxu0 %v1799
        %1831 = vmatpush1.bf16.msra.mxu0 %v1798
        %1832 = vmatprep.subr.bf16.mxu0 %v1801
        %1833 = vmatpush1.bf16.msra.mxu0 %v1800
        %1834 = vmatprep.subr.bf16.mxu0 %v1803
        %1835 = vmatpush1.bf16.msra.mxu0 %v1802
        %1836 = vmatprep.subr.bf16.mxu0 %v1805
        %1837 = vmatpush1.bf16.msra.mxu0 %v1804
        %1838 = vmatprep.subr.bf16.mxu0 %v1807
        %1839 = vmatpush1.bf16.msra.mxu0 %v1806
        %1840 = vmatprep.subr.bf16.mxu0 0
        %1841 = vmatpush1.bf16.msra.mxu0 0
        %1842 = vmatprep.subr.bf16.mxu0 0
        %1843 = vmatpush1.bf16.msra.mxu0 0
        %1844 = vmatprep.subr.bf16.mxu0 0
        %1845 = vmatpush1.bf16.msra.mxu0 0
        %1846 = vmatprep.subr.bf16.mxu0 0
        %1847 = vmatpush1.bf16.msra.mxu0 0
        %1848 = vmatprep.subr.bf16.mxu0 0
        %1849 = vmatpush1.bf16.msra.mxu0 0
        %1850 = vmatprep.subr.bf16.mxu0 0
        %1851 = vmatpush1.bf16.msra.mxu0 0
        %1852 = vmatprep.subr.bf16.mxu0 0
        %1853 = vmatpush1.bf16.msra.mxu0 0
        %1854 = vmatprep.subr.bf16.mxu0 0
        %1855 = vmatpush1.bf16.msra.mxu0 0
        %1856 = vmatprep.mubr.bf16.mxu0 0
        %1857 = vmatmul.mubr.bf16.gmra.mrb[0].mxu0 %v1715
        %v1858 = vpop.f32.mrb[0].mxu0
        %v1859 = vadd.f32 %v1737, %v1858
        %v1860 = vpop.f32.mrb[0].mxu0
        %v1861 = vadd.f32 %v1741, %v1860
        %v1862 = vpop.f32.mrb[0].mxu0
        %v1863 = vadd.f32 %v1737, %v1862
        %v1864 = vpop.f32.mrb[0].mxu0
        %v1865 = vadd.f32 %v1741, %v1864
        %1866 = vdwg.mxu0
        %v1867 = vmax.f32 %v1859, 0.0
        %v1868 = vmax.f32 %v1861, 0.0
        %v1869 = vmax.f32 %v1863, 0.0
        %v1870 = vmax.f32 %v1865, 0.0
        %v1871 = vpack.c.bf16 %v1869, %v1867
        %v1872 = vpack.c.bf16 %v1870, %v1868
        %v1873 = vld [vmem:[#allocation16] sm:$0xf]
        %v1874 = vld [vmem:[#allocation16 + $0x4] sm:$0xf]
        %v1875 = vld [vmem:[#allocation16 + $0x8] sm:$0xf]
        %v1876 = vld [vmem:[#allocation16 + $0xc] sm:$0xf]
        %v1877 = vld [vmem:[#allocation16 + $0x10] sm:$0xf]
        %v1878 = vld [vmem:[#allocation16 + $0x14] sm:$0xf]
        %v1879 = vld [vmem:[#allocation16 + $0x18] sm:$0xf]
        %v1880 = vld [vmem:[#allocation16 + $0x1c] sm:$0xf]
        %v1881 = vld [vmem:[#allocation16 + $0x20] sm:$0xf]
        %v1882 = vld [vmem:[#allocation16 + $0x24] sm:$0xf]
        %v1883 = vld [vmem:[#allocation16 + $0x28] sm:$0xf]
        %v1884 = vld [vmem:[#allocation16 + $0x2c] sm:$0xf]
        %v1885 = vld [vmem:[#allocation16 + $0x30] sm:$0xf]
        %v1886 = vld [vmem:[#allocation16 + $0x34] sm:$0xf]
        %v1887 = vld [vmem:[#allocation16 + $0x38] sm:$0xf]
        %v1888 = vld [vmem:[#allocation16 + $0x3c] sm:$0xf]
        %v1889 = vld [vmem:[#allocation16 + $0x40] sm:$0xf]
        %v1890 = vld [vmem:[#allocation16 + $0x44] sm:$0xf]
        %v1891 = vld [vmem:[#allocation16 + $0x48] sm:$0xf]
        %v1892 = vld [vmem:[#allocation16 + $0x4c] sm:$0xf]
        %v1893 = vld [vmem:[#allocation16 + $0x50] sm:$0xf]
        %v1894 = vld [vmem:[#allocation16 + $0x54] sm:$0xf]
        %v1895 = vld [vmem:[#allocation16 + $0x58] sm:$0xf]
        %v1896 = vld [vmem:[#allocation16 + $0x5c] sm:$0xf]
        %v1897 = vld [vmem:[#allocation16 + $0x60] sm:$0xf]
        %v1898 = vld [vmem:[#allocation16 + $0x64] sm:$0xf]
        %v1899 = vld [vmem:[#allocation16 + $0x68] sm:$0xf]
        %v1900 = vld [vmem:[#allocation16 + $0x6c] sm:$0xf]
        %v1901 = vld [vmem:[#allocation16 + $0x70] sm:$0xf]
        %v1902 = vld [vmem:[#allocation16 + $0x74] sm:$0xf]
        %v1903 = vld [vmem:[#allocation16 + $0x78] sm:$0xf]
        %v1904 = vld [vmem:[#allocation16 + $0x7c] sm:$0xf]
        %v1905 = vlaneseq
        %v1906 = vshrl.u32 %v1905, 7
        %v1907 = vsub.s32 0, %v1906
        %v1908 = vrot.slane %v668, %v1907
        %v1941 = vunpack.c.l.b16 %v1873
        %v1942 = vunpack.c.l.b16 %v1874
        %v1943 = vunpack.c.l.b16 %v1875
        %v1944 = vunpack.c.l.b16 %v1876
        %v1945 = vunpack.c.l.b16 %v1877
        %v1946 = vunpack.c.l.b16 %v1878
        %v1947 = vunpack.c.l.b16 %v1879
        %v1948 = vunpack.c.l.b16 %v1880
        %v1949 = vunpack.c.l.b16 %v1881
        %v1950 = vunpack.c.l.b16 %v1882
        %v1951 = vunpack.c.l.b16 %v1883
        %v1952 = vunpack.c.l.b16 %v1884
        %v1953 = vunpack.c.l.b16 %v1885
        %v1954 = vunpack.c.l.b16 %v1886
        %v1955 = vunpack.c.l.b16 %v1887
        %v1956 = vunpack.c.l.b16 %v1888
        %v1957 = vunpack.c.l.b16 %v1889
        %v1958 = vunpack.c.l.b16 %v1890
        %v1959 = vunpack.c.l.b16 %v1891
        %v1960 = vunpack.c.l.b16 %v1892
        %v1961 = vunpack.c.l.b16 %v1893
        %v1962 = vunpack.c.l.b16 %v1894
        %v1963 = vunpack.c.l.b16 %v1895
        %v1964 = vunpack.c.l.b16 %v1896
        %v1965 = vunpack.c.l.b16 %v1897
        %v1966 = vunpack.c.l.b16 %v1898
        %v1967 = vunpack.c.l.b16 %v1899
        %v1968 = vunpack.c.l.b16 %v1900
        %v1969 = vunpack.c.l.b16 %v1901
        %v1970 = vunpack.c.l.b16 %v1902
        %v1971 = vunpack.c.l.b16 %v1903
        %v1972 = vunpack.c.l.b16 %v1904
        %v1973 = vpack.c.b16 %v1942, %v1941
        %v1974 = vpack.c.b16 %v1944, %v1943
        %v1975 = vpack.c.b16 %v1946, %v1945
        %v1976 = vpack.c.b16 %v1948, %v1947
        %v1977 = vpack.c.b16 %v1950, %v1949
        %v1978 = vpack.c.b16 %v1952, %v1951
        %v1979 = vpack.c.b16 %v1954, %v1953
        %v1980 = vpack.c.b16 %v1956, %v1955
        %v1981 = vpack.c.b16 %v1958, %v1957
        %v1982 = vpack.c.b16 %v1960, %v1959
        %v1983 = vpack.c.b16 %v1962, %v1961
        %v1984 = vpack.c.b16 %v1964, %v1963
        %v1985 = vpack.c.b16 %v1966, %v1965
        %v1986 = vpack.c.b16 %v1968, %v1967
        %v1987 = vpack.c.b16 %v1970, %v1969
        %v1988 = vpack.c.b16 %v1972, %v1971
        %2005 = vmatprep.subr.bf16.mxu0 0
        %2006 = vmatpush1.bf16.msra.mxu0 %v1973
        %2007 = vmatprep.subr.bf16.mxu0 0
        %2008 = vmatpush1.bf16.msra.mxu0 %v1974
        %2009 = vmatprep.subr.bf16.mxu0 0
        %2010 = vmatpush1.bf16.msra.mxu0 %v1975
        %2011 = vmatprep.subr.bf16.mxu0 0
        %2012 = vmatpush1.bf16.msra.mxu0 %v1976
        %2013 = vmatprep.subr.bf16.mxu0 0
        %2014 = vmatpush1.bf16.msra.mxu0 %v1977
        %2015 = vmatprep.subr.bf16.mxu0 0
        %2016 = vmatpush1.bf16.msra.mxu0 %v1978
        %2017 = vmatprep.subr.bf16.mxu0 0
        %2018 = vmatpush1.bf16.msra.mxu0 %v1979
        %2019 = vmatprep.subr.bf16.mxu0 0
        %2020 = vmatpush1.bf16.msra.mxu0 %v1980
        %2021 = vmatprep.subr.bf16.mxu0 0
        %2022 = vmatpush1.bf16.msra.mxu0 %v1981
        %2023 = vmatprep.subr.bf16.mxu0 0
        %2024 = vmatpush1.bf16.msra.mxu0 %v1982
        %2025 = vmatprep.subr.bf16.mxu0 0
        %2026 = vmatpush1.bf16.msra.mxu0 %v1983
        %2027 = vmatprep.subr.bf16.mxu0 0
        %2028 = vmatpush1.bf16.msra.mxu0 %v1984
        %2029 = vmatprep.subr.bf16.mxu0 0
        %2030 = vmatpush1.bf16.msra.mxu0 %v1985
        %2031 = vmatprep.subr.bf16.mxu0 0
        %2032 = vmatpush1.bf16.msra.mxu0 %v1986
        %2033 = vmatprep.subr.bf16.mxu0 0
        %2034 = vmatpush1.bf16.msra.mxu0 %v1987
        %2035 = vmatprep.subr.bf16.mxu0 0
        %2036 = vmatpush1.bf16.msra.mxu0 %v1988
        %2037 = vmatprep.mubr.bf16.mxu0 %v1872
        %2038 = vmatmul.mubr.bf16.gmra.mrb[0].mxu0 %v1871
        %v2039 = vpop.f32.mrb[0].mxu0
        %v2040 = vadd.f32 %v1908, %v2039
        %v2041 = vpop.f32.mrb[0].mxu0
        %v2042 = vpop.f32.mrb[0].mxu0
        %v2043 = vadd.f32 %v1908, %v2042
        %v2044 = vpop.f32.mrb[0].mxu0
        %2045 = vdwg.mxu0
        %v2046 = vadd.f32 %v2040, %v1713
        %v2047 = vadd.f32 %v2043, %v1714
        %v2048 = vld [vmem:[%s11 + $0x2] sm:$0x1]
        %v2049 = vld [vmem:[%s11 + $0x3] sm:$0x1]
        %2050 = vadd.xlane.f32.xlu0 %v2046
        %v2051 = vpop.xlane.xlu0 %2050
        %2052 = vadd.xlane.f32.xlu0 %v2047
        %v2053 = vpop.xlane.xlu0 %2052
        %v2054 = vmul.f32 %v2051, %v1684
        %v2055 = vmul.f32 %v2053, %v1684
        %v2056 = vsub.f32 %v2046, %v2054
        %v2057 = vsub.f32 %v2047, %v2055
        %v2058 = vmul.f32 %v2056, %v2056
        %v2059 = vmul.f32 %v2057, %v2057
        %2060 = vadd.xlane.f32.xlu0 %v2058
        %v2061 = vpop.xlane.xlu0 %2060
        %2062 = vadd.xlane.f32.xlu0 %v2059
        %v2063 = vpop.xlane.xlu0 %2062
        %v2064 = vmul.f32 %v2061, %v1684
        %v2065 = vmul.f32 %v2063, %v1684
        %v2066 = vadd.f32 %v2064, 1e-05
        %v2067 = vadd.f32 %v2065, 1e-05
        %v2068 = vrsqrt.pop %v2066
        %v2069 = vrsqrt.pop %v2067
        %v2070 = vmul.f32 %v2056, %v2068
        %v2071 = vmul.f32 %v2057, %v2069
        %v2072 = vlaneseq
        %v2073 = vshrl.u32 %v2072, 7
        %v2074 = vsub.s32 0, %v2073
        %v2075 = vrot.slane %v2048, %v2074
        %v2076 = vmul.f32 %v2070, %v2075
        %v2077 = vmul.f32 %v2071, %v2075
        %v2078 = vlaneseq
        %v2079 = vshrl.u32 %v2078, 7
        %v2080 = vsub.s32 0, %v2079
        %v2081 = vrot.slane %v2049, %v2080
        %v2082 = vadd.f32 %v2076, %v2081
        %v2083 = vadd.f32 %v2077, %v2081
        %2084 = vst [vmem:[%s646] sm:$0xff] %v2082
        %2085 = vst [vmem:[%s646 + $0x8] sm:$0xff] %v2083
        %s2086 = sand.u32 %s331, 1
        %s2087 = scalar_lea.sflag [#allocation4], %s2086
        %s2088 = sand.u32 %s331, 1
        %s2089 = smul.addr %s2088, 16
        %s2090 = scalar_lea.vmem [#allocation17], %s2089
        %s2091 = sand.u32 %s359, 1
        %s2092 = scalar_lea.sflag [#allocation19], %s2091
        %s2093 = sand.u32 %s359, 1
        %s2094 = smul.addr %s2093, 32
        %s2095 = scalar_lea.vmem [#allocation18], %s2094
        // Predicated region
        $region105: #{tpu_custom_call.1} parent=67 // pred_check
          %p2096 = pneg %p341
        $region106: #{tpu_custom_call.1} parent=67 // pred_check_branch
          %2098 = sbr.rel (%p2096) target = $region108
        $region107: #{tpu_custom_call.1} parent=67 // pred_region
          %s2099 = smul.u32 2, %s45
          %s2101 = ssub.s32 256, 256
          %2102 = vsyncadd %s2087, %s2101
          %s2103 = smul.addr %s44, 2
          %s2104 = sadd.s32 %s2099, %s2103
          %s2105 = smul.addr %s2104, 128
          %s2106 = scalar_lea.hbm %s12, %s2105
          %s2107 = sshll.u32 %s2090, 4
          %s2108 = int_to_ptr.vmem [resolvable:$true] %s2107
          %2113 = dma.vmem_to_hbm [thread:$0]  %s2108, 256, %s2106, %s2087, 128, 128, 8
        $region108: #{tpu_custom_call.1} parent=67 // pred_fallthru
          _
        // Predicated region
        $region109: #{tpu_custom_call.1} parent=67 // pred_check
          %p2114 = pneg %p369
        $region110: #{tpu_custom_call.1} parent=67 // pred_check_branch
          %2116 = sbr.rel (%p2114) target = $region112
        $region111: #{tpu_custom_call.1} parent=67 // pred_region
          %s2117 = smul.u32 2, %s45
          %s2119 = ssub.s32 512, 512
          %2120 = vsyncadd %s2092, %s2119
          %s2121 = smul.addr %s44, 8
          %s2122 = sadd.s32 %s2117, %s2121
          %s2123 = smul.addr %s2122, 64
          %s2124 = scalar_lea.hbm %s13, %s2123
          %s2125 = sshll.u32 %s2095, 4
          %s2126 = int_to_ptr.vmem [resolvable:$true] %s2125
          %2131 = dma.vmem_to_hbm [thread:$0]  %s2126, 512, %s2124, %s2092, 64, 64, 4
        $region112: #{tpu_custom_call.1} parent=67 // pred_fallthru
          _
      $region68: #{tpu_custom_call.1} parent=5 // pred_fallthru
        _
      %p2132 = scmp.le.s32.totalorder 2, %s35
      // Predicated region
      $region113: #{tpu_custom_call.1} parent=5 // pred_check
        %p2133 = pneg %p2132
      $region114: #{tpu_custom_call.1} parent=5 // pred_check_branch
        %2135 = sbr.rel (%p2133) target = $region116
      $region115: #{tpu_custom_call.1} parent=5 // pred_region
        %s2136 = ssub.s32 %s35, 2
        // Predicated region
        $region117: #{tpu_custom_call.1} parent=115 // pred_check
          %p2137 = pneg %p347
        $region118: #{tpu_custom_call.1} parent=115 // pred_check_branch
          %2139 = sbr.rel (%p2137) target = $region120
        $region119: #{tpu_custom_call.1} parent=115 // pred_region
          %s2140 = sand.u32 %s332, 1
          %s2141 = scalar_lea.sflag [#allocation4], %s2140
          %s2142 = sand.u32 %s332, 1
          %s2143 = smul.addr %s2142, 16
          %s2144 = scalar_lea.vmem [#allocation17], %s2143
          %2145 = dma.done %s2141, 256
        $region120: #{tpu_custom_call.1} parent=115 // pred_fallthru
          _
        // Predicated region
        $region121: #{tpu_custom_call.1} parent=115 // pred_check
          %p2146 = pneg %p375
        $region122: #{tpu_custom_call.1} parent=115 // pred_check_branch
          %2148 = sbr.rel (%p2146) target = $region124
        $region123: #{tpu_custom_call.1} parent=115 // pred_region
          %s2149 = sand.u32 %s360, 1
          %s2150 = scalar_lea.sflag [#allocation19], %s2149
          %s2151 = sand.u32 %s360, 1
          %s2152 = smul.addr %s2151, 32
          %s2153 = scalar_lea.vmem [#allocation18], %s2152
          %2154 = dma.done %s2150, 512
        $region124: #{tpu_custom_call.1} parent=115 // pred_fallthru
          _
      $region116: #{tpu_custom_call.1} parent=5 // pred_fallthru
        _
    $region6: #{tpu_custom_call.1} parent=1 // loop_footer
      %s39 = sadd.s32 1, %s35
    $region7: #{tpu_custom_call.1} parent=1 // loop_footer_branch
      %34 = sbr.rel target = $region3
    $region8: #{tpu_custom_call.1} parent=1 // loop_exit
      _
    %2155 = vsyncpa [#allocation3], 1
    %s2156 = scalar_lea.sflag [#allocation3], 1
    %2157 = vsyncpa %s2156, 1
    %2158 = vsyncpa [#allocation6], 1
    %s2159 = scalar_lea.sflag [#allocation6], 1
    %2160 = vsyncpa %s2159, 1
    %2161 = vsyncpa [#allocation9], 1
    %2162 = vsyncpa [#allocation12], 1
    %2163 = vsyncpa [#allocation15], 1
    %2164 = vsyncpa [#allocation4], 1
    %s2165 = scalar_lea.sflag [#allocation4], 1
    %2166 = vsyncpa %s2165, 1
    %2167 = vsyncpa [#allocation19], 1
    %s2168 = scalar_lea.sflag [#allocation19], 1
    %2169 = vsyncpa %s2168, 1

</llo_original>
